<compile_context>
chip_gen: v6e
topology: v6e:2x2x1
jax: 0.10.0
libtpu: 0.0.40
codegen_flags: <defaults>
</compile_context>

<pallas_src>
import math
import functools

import jax
import jax.numpy as jnp
from jax.experimental import pallas as pl
from jax.experimental.pallas import tpu as pltpu


def _mha_kernel(q_ref, k_ref, v_ref,
                wq_ref, bq_ref, wk_ref, bk_ref, wv_ref, bv_ref,
                wo_ref, bo_ref,
                o_ref,
                kh_ref, vh_ref,
                *, h, d_k):
    tq = q_ref.shape[1]        # query rows in this tile
    s_kv = k_ref.shape[1]      # full key/value sequence length
    d_model = q_ref.shape[2]

    # ---- K/V projections: only on the first q-tile of each batch element ----
    # (their BlockSpec index is constant across q-tiles, and the projected
    #  results are cached in bf16 VMEM scratch for all later q-tiles).
    @pl.when(pl.program_id(1) == 0)
    def _():
        k = k_ref[0].astype(jnp.bfloat16)      # (S, D)
        v = v_ref[0].astype(jnp.bfloat16)      # (S, D)
        kb = jnp.broadcast_to(k[None], (h, s_kv, d_model))
        vb = jnp.broadcast_to(v[None], (h, s_kv, d_model))
        Kh = jnp.einsum('hsd,hdk->hsk', kb, wk_ref[...],
                        preferred_element_type=jnp.float32) + bk_ref[...]   # (h, S, d_k)
        Vh = jnp.einsum('hsd,hdk->hsk', vb, wv_ref[...],
                        preferred_element_type=jnp.float32) + bv_ref[...]   # (h, S, d_k)
        kh_ref[...] = Kh.astype(jnp.bfloat16)
        vh_ref[...] = Vh.astype(jnp.bfloat16)

    # ---- Q projection for this q-tile (head-batched, no lane slicing) ----
    q = q_ref[0].astype(jnp.bfloat16)          # (TQ, D)
    qb = jnp.broadcast_to(q[None], (h, tq, d_model))
    Qh = jnp.einsum('hsd,hdk->hsk', qb, wq_ref[...],
                    preferred_element_type=jnp.float32) + bq_ref[...]       # (h, TQ, d_k)

    # Fold 1/sqrt(d_k) into Q (cheaper than scaling the (h,TQ,S) scores).
    Qh = Qh * (1.0 / math.sqrt(d_k))

    # ---- Scores: contract last dims of Q and cached K (no K transpose) ----
    scores = jnp.einsum('hqd,hkd->hqk',
                        Qh.astype(jnp.bfloat16), kh_ref[...],
                        preferred_element_type=jnp.float32)                 # (h, TQ, S)

    # Softmax in f32; exp + approx reciprocal go to the EUP slot (VALU-free).
    scores = scores - jnp.max(scores, axis=-1, keepdims=True)
    p = jnp.exp(scores)
    p = p * pl.reciprocal(jnp.sum(p, axis=-1, keepdims=True), approx=True)

    ctx = jnp.einsum('hqk,hkd->hqd',
                     p.astype(jnp.bfloat16), vh_ref[...],
                     preferred_element_type=jnp.float32)                    # (h, TQ, d_k)

    # Output projection without concatenating heads on the lane dim:
    # per-head matmul against (h, d_k, D) slices of W_o^T, then reduce over h.
    per_head = jnp.einsum('hqd,hde->hqe',
                          ctx.astype(jnp.bfloat16), wo_ref[...],
                          preferred_element_type=jnp.float32)               # (h, TQ, D)
    out = jnp.sum(per_head, axis=0) + bo_ref[...]                           # (TQ, D)
    o_ref[0] = out.astype(o_ref.dtype)


def multi_head_attention(q, v, k, params, *, h):
    """Mirrors MultiHeadAttentionBlock.forward(q, v, k, mask=None), eval mode."""
    B, S, D = q.shape
    assert D % h == 0
    d_k = D // h

    # Query-tile size: whole sequence for short S, 128-row tiles otherwise.
    tq = S if S <= 128 else 128
    assert S % tq == 0
    nq = S // tq

    # Host-side weight prep (plain XLA, outside the kernel).
    # PyTorch Linear: y = x @ W.T + b, W:(out,in).  Split the output dim into
    # heads so the kernel consumes head-major weight stacks.
    def head_in_proj(w):   # (out, in) -> (h, in, d_k)  == per-head W.T
        return w.reshape(h, d_k, D).transpose(0, 2, 1).astype(jnp.bfloat16)

    wq_h = head_in_proj(params["wq"])
    wk_h = head_in_proj(params["wk"])
    wv_h = head_in_proj(params["wv"])
    wo_h = params["wo"].T.reshape(h, d_k, D).astype(jnp.bfloat16)  # per-head rows of W_o.T

    bq_h = params["bq"].reshape(h, 1, d_k).astype(jnp.float32)
    bk_h = params["bk"].reshape(h, 1, d_k).astype(jnp.float32)
    bv_h = params["bv"].reshape(h, 1, d_k).astype(jnp.float32)
    bo_2 = params["bo"].reshape(1, D).astype(jnp.float32)

    kernel = functools.partial(_mha_kernel, h=h, d_k=d_k)

    q_spec = pl.BlockSpec((1, tq, D), lambda b, qi: (b, qi, 0))
    kv_spec = pl.BlockSpec((1, S, D), lambda b, qi: (b, 0, 0))
    w_in_spec = pl.BlockSpec((h, D, d_k), lambda b, qi: (0, 0, 0))
    b_in_spec = pl.BlockSpec((h, 1, d_k), lambda b, qi: (0, 0, 0))
    wo_spec = pl.BlockSpec((h, d_k, D), lambda b, qi: (0, 0, 0))
    bo_spec = pl.BlockSpec((1, D), lambda b, qi: (0, 0))
    out_spec = pl.BlockSpec((1, tq, D), lambda b, qi: (b, qi, 0))

    return pl.pallas_call(
        kernel,
        out_shape=jax.ShapeDtypeStruct((B, S, D), q.dtype),
        grid_spec=pltpu.PrefetchScalarGridSpec(
            num_scalar_prefetch=0,
            grid=(B, nq),
            in_specs=[q_spec, kv_spec, kv_spec,
                      w_in_spec, b_in_spec, w_in_spec, b_in_spec,
                      w_in_spec, b_in_spec, wo_spec, bo_spec],
            out_specs=out_spec,
            scratch_shapes=[pltpu.VMEM((h, S, d_k), jnp.bfloat16),   # cached K_h
                            pltpu.VMEM((h, S, d_k), jnp.bfloat16)],  # cached V_h
        ),
        compiler_params=pltpu.CompilerParams(
            # q-tile axis carries the cached K/V projections -> "arbitrary";
            # batch axis is independent -> "parallel" (megacore on v7x).
            dimension_semantics=("parallel", "arbitrary"),
            vmem_limit_bytes=48 * 1024 * 1024,
        ),
    )(q, k, v, wq_h, bq_h, wk_h, bk_h, wv_h, bv_h, wo_h, bo_2)


def _reference(q, v, k, params, *, h):
    """Pure-JAX f32 reference of the PyTorch forward (mask=None, dropout off)."""
    B, S, D = q.shape
    d_k = D // h
    lin = lambda x, w, b: x @ w.T + b
    Q = lin(q, params["wq"], params["bq"]).reshape(B, S, h, d_k).transpose(0, 2, 1, 3)
    K = lin(k, params["wk"], params["bk"]).reshape(B, S, h, d_k).transpose(0, 2, 1, 3)
    V = lin(v, params["wv"], params["bv"]).reshape(B, S, h, d_k).transpose(0, 2, 1, 3)
    scores = Q @ K.transpose(0, 1, 3, 2) / math.sqrt(d_k)
    p = jax.nn.softmax(scores, axis=-1)
    x = (p @ V).transpose(0, 2, 1, 3).reshape(B, S, D)
    return lin(x, params["wo"], params["bo"])


if __name__ == "__main__":
    B, S, D, H = 2, 8, 32, 4

    key = jax.random.PRNGKey(0)
    ks = jax.random.split(key, 12)
    scale = 1.0 / math.sqrt(D)
    params = {
        "wq": jax.random.uniform(ks[0], (D, D), jnp.float32, -scale, scale),
        "bq": jax.random.uniform(ks[1], (D,), jnp.float32, -scale, scale),
        "wk": jax.random.uniform(ks[2], (D, D), jnp.float32, -scale, scale),
        "bk": jax.random.uniform(ks[3], (D,), jnp.float32, -scale, scale),
        "wv": jax.random.uniform(ks[4], (D, D), jnp.float32, -scale, scale),
        "bv": jax.random.uniform(ks[5], (D,), jnp.float32, -scale, scale),
        "wo": jax.random.uniform(ks[6], (D, D), jnp.float32, -scale, scale),
        "bo": jax.random.uniform(ks[7], (D,), jnp.float32, -scale, scale),
    }
    q_in = jax.random.normal(ks[8], (B, S, D), jnp.float32)
    v_in = jax.random.normal(ks[9], (B, S, D), jnp.float32)
    k_in = jax.random.normal(ks[10], (B, S, D), jnp.float32)

    out = multi_head_attention(q_in, v_in, k_in, params, h=H)
    out = jax.block_until_ready(out)

    ref = _reference(q_in, v_in, k_in, params, h=H)
    assert out.shape == (B, S, D)
    # bf16 MXU inputs + approx reciprocal -> relaxed tolerance vs f32 reference.
    assert jnp.allclose(out, ref, atol=2e-2, rtol=2e-2), "mismatch vs reference"

    print("KERNEL_OK")
</pallas_src>

<mosaic_0001>
module attributes {stable_mosaic.version = 11 : i64} {
  func.func @_mha_kernel(%arg0: i32, %arg1: i32, %arg2: memref<1x8x32xf32, #tpu.memory_space<vmem>>, %arg3: memref<1x8x32xf32, #tpu.memory_space<vmem>>, %arg4: memref<1x8x32xf32, #tpu.memory_space<vmem>>, %arg5: memref<4x32x8xbf16, #tpu.memory_space<vmem>>, %arg6: memref<4x1x8xf32, #tpu.memory_space<vmem>>, %arg7: memref<4x32x8xbf16, #tpu.memory_space<vmem>>, %arg8: memref<4x1x8xf32, #tpu.memory_space<vmem>>, %arg9: memref<4x32x8xbf16, #tpu.memory_space<vmem>>, %arg10: memref<4x1x8xf32, #tpu.memory_space<vmem>>, %arg11: memref<4x8x32xbf16, #tpu.memory_space<vmem>>, %arg12: memref<1x32xf32, #tpu.memory_space<vmem>>, %arg13: memref<1x8x32xf32, #tpu.memory_space<vmem>>, %arg14: memref<4x8x8xbf16, #tpu.memory_space<vmem>>, %arg15: memref<4x8x8xbf16, #tpu.memory_space<vmem>>) attributes {dimension_semantics = [#tpu.dimension_semantics<parallel>, #tpu.dimension_semantics<arbitrary>], iteration_bounds = array<i64: 2, 1>, scalar_prefetch = 0 : i64, scratch_operands = 2 : i64, tpu.core_type = #tpu.core_type<tc>, window_params = [{transform_indices = @transform_0, window_bounds = array<i64: 1, 8, 32>}, {transform_indices = @transform_1, window_bounds = array<i64: 1, 8, 32>}, {transform_indices = @transform_2, window_bounds = array<i64: 1, 8, 32>}, {pipeline_mode = #tpu.pipeline_mode<synchronous>, transform_indices = @transform_3, window_bounds = array<i64: 4, 32, 8>}, {pipeline_mode = #tpu.pipeline_mode<synchronous>, transform_indices = @transform_4, window_bounds = array<i64: 4, 1, 8>}, {pipeline_mode = #tpu.pipeline_mode<synchronous>, transform_indices = @transform_5, window_bounds = array<i64: 4, 32, 8>}, {pipeline_mode = #tpu.pipeline_mode<synchronous>, transform_indices = @transform_6, window_bounds = array<i64: 4, 1, 8>}, {pipeline_mode = #tpu.pipeline_mode<synchronous>, transform_indices = @transform_7, window_bounds = array<i64: 4, 32, 8>}, {pipeline_mode = #tpu.pipeline_mode<synchronous>, transform_indices = @transform_8, window_bounds = array<i64: 4, 1, 8>}, {pipeline_mode = #tpu.pipeline_mode<synchronous>, transform_indices = @transform_9, window_bounds = array<i64: 4, 8, 32>}, {pipeline_mode = #tpu.pipeline_mode<synchronous>, transform_indices = @transform_10, window_bounds = array<i64: 1, 32>}, {transform_indices = @transform_11, window_bounds = array<i64: 1, 8, 32>}]} {
    %c0_i32 = arith.constant 0 : i32
    %0 = arith.cmpi eq, %arg1, %c0_i32 : i32
    %1 = arith.extui %0 : i1 to i32
    %c0_i32_0 = arith.constant 0 : i32
    %2 = arith.cmpi ne, %1, %c0_i32_0 : i32
    scf.if %2 {
      %c0_30 = arith.constant 0 : index
      %c0_31 = arith.constant 0 : index
      %c0_32 = arith.constant 0 : index
      %42 = vector.load %arg3[%c0_30, %c0_31, %c0_32] : memref<1x8x32xf32, #tpu.memory_space<vmem>>, vector<1x8x32xf32>
      %43 = vector.shape_cast %42 : vector<1x8x32xf32> to vector<8x32xf32>
      %44 = arith.truncf %43 : vector<8x32xf32> to vector<8x32xbf16>
      %c0_33 = arith.constant 0 : index
      %c0_34 = arith.constant 0 : index
      %c0_35 = arith.constant 0 : index
      %45 = vector.load %arg4[%c0_33, %c0_34, %c0_35] : memref<1x8x32xf32, #tpu.memory_space<vmem>>, vector<1x8x32xf32>
      %46 = vector.shape_cast %45 : vector<1x8x32xf32> to vector<8x32xf32>
      %47 = arith.truncf %46 : vector<8x32xf32> to vector<8x32xbf16>
      %48 = vector.shape_cast %44 : vector<8x32xbf16> to vector<1x8x32xbf16>
      %49 = vector.shape_cast %48 : vector<1x8x32xbf16> to vector<1x8x32xbf16>
      %50 = vector.broadcast %49 : vector<1x8x32xbf16> to vector<4x8x32xbf16>
      %51 = vector.shape_cast %47 : vector<8x32xbf16> to vector<1x8x32xbf16>
      %52 = vector.shape_cast %51 : vector<1x8x32xbf16> to vector<1x8x32xbf16>
      %53 = vector.broadcast %52 : vector<1x8x32xbf16> to vector<4x8x32xbf16>
      %c0_36 = arith.constant 0 : index
      %c0_37 = arith.constant 0 : index
      %c0_38 = arith.constant 0 : index
      %54 = vector.load %arg7[%c0_36, %c0_37, %c0_38] : memref<4x32x8xbf16, #tpu.memory_space<vmem>>, vector<4x32x8xbf16>
      "tpu.trace_start"() <{level = 10 : i32, message = "hsd,hdk->hsk"}> : () -> ()
      %cst_39 = arith.constant dense<0.000000e+00> : vector<4x8x8xf32>
      %55 = tpu.matmul %50, %54, %cst_39 {dimension_numbers = #tpu.dot_dimension_numbers<[2], [1], [1], [2], [0, 0, 0, 1, 1, 2], [0], [0]>} : vector<4x8x32xbf16>, vector<4x32x8xbf16>, vector<4x8x8xf32> -> vector<4x8x8xf32>
      "tpu.trace_stop"() : () -> ()
      %c0_40 = arith.constant 0 : index
      %c0_41 = arith.constant 0 : index
      %c0_42 = arith.constant 0 : index
      %56 = vector.load %arg8[%c0_40, %c0_41, %c0_42] : memref<4x1x8xf32, #tpu.memory_space<vmem>>, vector<4x1x8xf32>
      %57 = vector.broadcast %56 : vector<4x1x8xf32> to vector<4x8x8xf32>
      %58 = arith.addf %55, %57 : vector<4x8x8xf32>
      %c0_43 = arith.constant 0 : index
      %c0_44 = arith.constant 0 : index
      %c0_45 = arith.constant 0 : index
      %59 = vector.load %arg9[%c0_43, %c0_44, %c0_45] : memref<4x32x8xbf16, #tpu.memory_space<vmem>>, vector<4x32x8xbf16>
      "tpu.trace_start"() <{level = 10 : i32, message = "hsd,hdk->hsk"}> : () -> ()
      %cst_46 = arith.constant dense<0.000000e+00> : vector<4x8x8xf32>
      %60 = tpu.matmul %53, %59, %cst_46 {dimension_numbers = #tpu.dot_dimension_numbers<[2], [1], [1], [2], [0, 0, 0, 1, 1, 2], [0], [0]>} : vector<4x8x32xbf16>, vector<4x32x8xbf16>, vector<4x8x8xf32> -> vector<4x8x8xf32>
      "tpu.trace_stop"() : () -> ()
      %c0_47 = arith.constant 0 : index
      %c0_48 = arith.constant 0 : index
      %c0_49 = arith.constant 0 : index
      %61 = vector.load %arg10[%c0_47, %c0_48, %c0_49] : memref<4x1x8xf32, #tpu.memory_space<vmem>>, vector<4x1x8xf32>
      %62 = vector.broadcast %61 : vector<4x1x8xf32> to vector<4x8x8xf32>
      %63 = arith.addf %60, %62 : vector<4x8x8xf32>
      %64 = arith.truncf %58 : vector<4x8x8xf32> to vector<4x8x8xbf16>
      %c0_50 = arith.constant 0 : index
      %c0_51 = arith.constant 0 : index
      %c0_52 = arith.constant 0 : index
      %65 = vector.load %arg14[%c0_50, %c0_51, %c0_52] : memref<4x8x8xbf16, #tpu.memory_space<vmem>>, vector<4x8x8xbf16>
      tpu.vector_store %arg14[%c0_50, %c0_51, %c0_52], %64 {strides = array<i32>} : memref<4x8x8xbf16, #tpu.memory_space<vmem>>, vector<4x8x8xbf16>,
      %66 = arith.truncf %63 : vector<4x8x8xf32> to vector<4x8x8xbf16>
      %c0_53 = arith.constant 0 : index
      %c0_54 = arith.constant 0 : index
      %c0_55 = arith.constant 0 : index
      %67 = vector.load %arg15[%c0_53, %c0_54, %c0_55] : memref<4x8x8xbf16, #tpu.memory_space<vmem>>, vector<4x8x8xbf16>
      tpu.vector_store %arg15[%c0_53, %c0_54, %c0_55], %66 {strides = array<i32>} : memref<4x8x8xbf16, #tpu.memory_space<vmem>>, vector<4x8x8xbf16>,
    } else {
    }
    %c0 = arith.constant 0 : index
    %c0_1 = arith.constant 0 : index
    %c0_2 = arith.constant 0 : index
    %3 = vector.load %arg2[%c0, %c0_1, %c0_2] : memref<1x8x32xf32, #tpu.memory_space<vmem>>, vector<1x8x32xf32>
    %4 = vector.shape_cast %3 : vector<1x8x32xf32> to vector<8x32xf32>
    %5 = arith.truncf %4 : vector<8x32xf32> to vector<8x32xbf16>
    %6 = vector.shape_cast %5 : vector<8x32xbf16> to vector<1x8x32xbf16>
    %7 = vector.shape_cast %6 : vector<1x8x32xbf16> to vector<1x8x32xbf16>
    %8 = vector.broadcast %7 : vector<1x8x32xbf16> to vector<4x8x32xbf16>
    %c0_3 = arith.constant 0 : index
    %c0_4 = arith.constant 0 : index
    %c0_5 = arith.constant 0 : index
    %9 = vector.load %arg5[%c0_3, %c0_4, %c0_5] : memref<4x32x8xbf16, #tpu.memory_space<vmem>>, vector<4x32x8xbf16>
    "tpu.trace_start"() <{level = 10 : i32, message = "hsd,hdk->hsk"}> : () -> ()
    %cst = arith.constant dense<0.000000e+00> : vector<4x8x8xf32>
    %10 = tpu.matmul %8, %9, %cst {dimension_numbers = #tpu.dot_dimension_numbers<[2], [1], [1], [2], [0, 0, 0, 1, 1, 2], [0], [0]>} : vector<4x8x32xbf16>, vector<4x32x8xbf16>, vector<4x8x8xf32> -> vector<4x8x8xf32>
    "tpu.trace_stop"() : () -> ()
    %c0_6 = arith.constant 0 : index
    %c0_7 = arith.constant 0 : index
    %c0_8 = arith.constant 0 : index
    %11 = vector.load %arg6[%c0_6, %c0_7, %c0_8] : memref<4x1x8xf32, #tpu.memory_space<vmem>>, vector<4x1x8xf32>
    %12 = vector.broadcast %11 : vector<4x1x8xf32> to vector<4x8x8xf32>
    %13 = arith.addf %10, %12 : vector<4x8x8xf32>
    %cst_9 = arith.constant 0.353553385 : f32
    %14 = vector.broadcast %cst_9 : f32 to vector<4x8x8xf32>
    %15 = arith.mulf %13, %14 : vector<4x8x8xf32>
    %16 = arith.truncf %15 : vector<4x8x8xf32> to vector<4x8x8xbf16>
    %c0_10 = arith.constant 0 : index
    %c0_11 = arith.constant 0 : index
    %c0_12 = arith.constant 0 : index
    %17 = vector.load %arg14[%c0_10, %c0_11, %c0_12] : memref<4x8x8xbf16, #tpu.memory_space<vmem>>, vector<4x8x8xbf16>
    "tpu.trace_start"() <{level = 10 : i32, message = "hqd,hkd->hqk"}> : () -> ()
    %cst_13 = arith.constant dense<0.000000e+00> : vector<4x8x8xf32>
    %18 = tpu.matmul %16, %17, %cst_13 {dimension_numbers = #tpu.dot_dimension_numbers<[2], [2], [1], [1], [0, 0, 0, 1, 1, 1], [0], [0]>} : vector<4x8x8xbf16>, vector<4x8x8xbf16>, vector<4x8x8xf32> -> vector<4x8x8xf32>
    "tpu.trace_stop"() : () -> ()
    %cst_14 = arith.constant dense<0xFF800000> : vector<4x8xf32>
    %19 = vector.multi_reduction <maximumf>, %18, %cst_14 [2] : vector<4x8x8xf32> to vector<4x8xf32>
    %20 = vector.shape_cast %19 : vector<4x8xf32> to vector<4x8x1xf32>
    %21 = vector.broadcast %20 : vector<4x8x1xf32> to vector<4x8x8xf32>
    %22 = arith.subf %18, %21 : vector<4x8x8xf32>
    %23 = math.exp %22 : vector<4x8x8xf32>
    %cst_15 = arith.constant dense<0.000000e+00> : vector<4x8xf32>
    %24 = vector.multi_reduction <add>, %23, %cst_15 [2] : vector<4x8x8xf32> to vector<4x8xf32>
    %25 = vector.shape_cast %24 : vector<4x8xf32> to vector<4x8x1xf32>
    %26 = tpu.reciprocal %25 {approx = true} : vector<4x8x1xf32> -> vector<4x8x1xf32>
    %27 = vector.broadcast %26 : vector<4x8x1xf32> to vector<4x8x8xf32>
    %28 = arith.mulf %23, %27 : vector<4x8x8xf32>
    %29 = arith.truncf %28 : vector<4x8x8xf32> to vector<4x8x8xbf16>
    %c0_16 = arith.constant 0 : index
    %c0_17 = arith.constant 0 : index
    %c0_18 = arith.constant 0 : index
    %30 = vector.load %arg15[%c0_16, %c0_17, %c0_18] : memref<4x8x8xbf16, #tpu.memory_space<vmem>>, vector<4x8x8xbf16>
    "tpu.trace_start"() <{level = 10 : i32, message = "hqk,hkd->hqd"}> : () -> ()
    %cst_19 = arith.constant dense<0.000000e+00> : vector<4x8x8xf32>
    %31 = tpu.matmul %29, %30, %cst_19 {dimension_numbers = #tpu.dot_dimension_numbers<[2], [1], [1], [2], [0, 0, 0, 1, 1, 2], [0], [0]>} : vector<4x8x8xbf16>, vector<4x8x8xbf16>, vector<4x8x8xf32> -> vector<4x8x8xf32>
    "tpu.trace_stop"() : () -> ()
    %32 = arith.truncf %31 : vector<4x8x8xf32> to vector<4x8x8xbf16>
    %c0_20 = arith.constant 0 : index
    %c0_21 = arith.constant 0 : index
    %c0_22 = arith.constant 0 : index
    %33 = vector.load %arg11[%c0_20, %c0_21, %c0_22] : memref<4x8x32xbf16, #tpu.memory_space<vmem>>, vector<4x8x32xbf16>
    "tpu.trace_start"() <{level = 10 : i32, message = "hqd,hde->hqe"}> : () -> ()
    %cst_23 = arith.constant dense<0.000000e+00> : vector<4x8x32xf32>
    %34 = tpu.matmul %32, %33, %cst_23 {dimension_numbers = #tpu.dot_dimension_numbers<[2], [1], [1], [2], [0, 0, 0, 1, 1, 2], [0], [0]>} : vector<4x8x8xbf16>, vector<4x8x32xbf16>, vector<4x8x32xf32> -> vector<4x8x32xf32>
    "tpu.trace_stop"() : () -> ()
    %cst_24 = arith.constant dense<0.000000e+00> : vector<8x32xf32>
    %35 = vector.multi_reduction <add>, %34, %cst_24 [0] : vector<4x8x32xf32> to vector<8x32xf32>
    %c0_25 = arith.constant 0 : index
    %c0_26 = arith.constant 0 : index
    %36 = vector.load %arg12[%c0_25, %c0_26] : memref<1x32xf32, #tpu.memory_space<vmem>>, vector<1x32xf32>
    %37 = vector.broadcast %36 : vector<1x32xf32> to vector<8x32xf32>
    %38 = arith.addf %35, %37 : vector<8x32xf32>
    %c0_27 = arith.constant 0 : index
    %c0_28 = arith.constant 0 : index
    %c0_29 = arith.constant 0 : index
    %39 = vector.load %arg13[%c0_27, %c0_28, %c0_29] : memref<1x8x32xf32, #tpu.memory_space<vmem>>, vector<1x8x32xf32>
    %40 = vector.shape_cast %39 : vector<1x8x32xf32> to vector<8x32xf32>
    %41 = vector.shape_cast %38 : vector<8x32xf32> to vector<1x8x32xf32>
    tpu.vector_store %arg13[%c0_27, %c0_28, %c0_29], %41 {strides = array<i32>} : memref<1x8x32xf32, #tpu.memory_space<vmem>>, vector<1x8x32xf32>,
    return
  }
  func.func @transform_0(%arg0: i32, %arg1: i32) -> (i32, i32, i32) {
    %c0_i32 = arith.constant 0 : i32
    %c0_i32_0 = arith.constant 0 : i32
    return %arg0, %arg1, %c0_i32 : i32, i32, i32
  }
  func.func @transform_1(%arg0: i32, %arg1: i32) -> (i32, i32, i32) {
    %c0_i32 = arith.constant 0 : i32
    %c0_i32_0 = arith.constant 0 : i32
    %c0_i32_1 = arith.constant 0 : i32
    return %arg0, %c0_i32, %c0_i32_0 : i32, i32, i32
  }
  func.func @transform_2(%arg0: i32, %arg1: i32) -> (i32, i32, i32) {
    %c0_i32 = arith.constant 0 : i32
    %c0_i32_0 = arith.constant 0 : i32
    %c0_i32_1 = arith.constant 0 : i32
    return %arg0, %c0_i32, %c0_i32_0 : i32, i32, i32
  }
  func.func @transform_3(%arg0: i32, %arg1: i32) -> (i32, i32, i32) {
    %c0_i32 = arith.constant 0 : i32
    %c0_i32_0 = arith.constant 0 : i32
    %c0_i32_1 = arith.constant 0 : i32
    %c0_i32_2 = arith.constant 0 : i32
    return %c0_i32, %c0_i32_0, %c0_i32_1 : i32, i32, i32
  }
  func.func @transform_4(%arg0: i32, %arg1: i32) -> (i32, i32, i32) {
    %c0_i32 = arith.constant 0 : i32
    %c0_i32_0 = arith.constant 0 : i32
    %c0_i32_1 = arith.constant 0 : i32
    %c0_i32_2 = arith.constant 0 : i32
    return %c0_i32, %c0_i32_0, %c0_i32_1 : i32, i32, i32
  }
  func.func @transform_5(%arg0: i32, %arg1: i32) -> (i32, i32, i32) {
    %c0_i32 = arith.constant 0 : i32
    %c0_i32_0 = arith.constant 0 : i32
    %c0_i32_1 = arith.constant 0 : i32
    %c0_i32_2 = arith.constant 0 : i32
    return %c0_i32, %c0_i32_0, %c0_i32_1 : i32, i32, i32
  }
  func.func @transform_6(%arg0: i32, %arg1: i32) -> (i32, i32, i32) {
    %c0_i32 = arith.constant 0 : i32
    %c0_i32_0 = arith.constant 0 : i32
    %c0_i32_1 = arith.constant 0 : i32
    %c0_i32_2 = arith.constant 0 : i32
    return %c0_i32, %c0_i32_0, %c0_i32_1 : i32, i32, i32
  }
  func.func @transform_7(%arg0: i32, %arg1: i32) -> (i32, i32, i32) {
    %c0_i32 = arith.constant 0 : i32
    %c0_i32_0 = arith.constant 0 : i32
    %c0_i32_1 = arith.constant 0 : i32
    %c0_i32_2 = arith.constant 0 : i32
    return %c0_i32, %c0_i32_0, %c0_i32_1 : i32, i32, i32
  }
  func.func @transform_8(%arg0: i32, %arg1: i32) -> (i32, i32, i32) {
    %c0_i32 = arith.constant 0 : i32
    %c0_i32_0 = arith.constant 0 : i32
    %c0_i32_1 = arith.constant 0 : i32
    %c0_i32_2 = arith.constant 0 : i32
    return %c0_i32, %c0_i32_0, %c0_i32_1 : i32, i32, i32
  }
  func.func @transform_9(%arg0: i32, %arg1: i32) -> (i32, i32, i32) {
    %c0_i32 = arith.constant 0 : i32
    %c0_i32_0 = arith.constant 0 : i32
    %c0_i32_1 = arith.constant 0 : i32
    %c0_i32_2 = arith.constant 0 : i32
    return %c0_i32, %c0_i32_0, %c0_i32_1 : i32, i32, i32
  }
  func.func @transform_10(%arg0: i32, %arg1: i32) -> (i32, i32) {
    %c0_i32 = arith.constant 0 : i32
    %c0_i32_0 = arith.constant 0 : i32
    %c0_i32_1 = arith.constant 0 : i32
    return %c0_i32, %c0_i32_0 : i32, i32
  }
  func.func @transform_11(%arg0: i32, %arg1: i32) -> (i32, i32, i32) {
    %c0_i32 = arith.constant 0 : i32
    %c0_i32_0 = arith.constant 0 : i32
    return %arg0, %arg1, %c0_i32 : i32, i32, i32
  }
}

</mosaic_0001>

<llo_original>
// kernel: tpu_custom_call.1
$region0: #{tpu_custom_call.1}
  #allocation0 [shape = 'u32[]', space=smem, size = 0x4, offset = 0x4, fixed_abs, tag = 'smem constant byte address 0x4 - core index']
  #allocation1 [shape = 'u32[144,128]{1,0:T(1,128)}', space=vmem, size = 0x12000, scoped, tag = 'internal scratch']
  #allocation2 [shape = 'bf16[4,8,8]{2,1,0:T(8,128)(2,1)}', space=vmem, size = 0x2000, scoped, tag = 'scratch operand']
  #allocation3 [shape = 'bf16[4,8,8]{2,1,0:T(8,128)(2,1)}', space=vmem, size = 0x2000, scoped, tag = 'scratch operand']
  %s0 = inlined_call_operand.vmem [shape: f32[2,8,32], index: 0, kind: input, shape index: {}]
  %s1 = inlined_call_operand.vmem [shape: f32[2,8,32], index: 1, kind: input, shape index: {}]
  %s2 = inlined_call_operand.vmem [shape: f32[2,8,32], index: 2, kind: input, shape index: {}]
  %s3 = inlined_call_operand.vmem [shape: bf16[4,32,8], index: 3, kind: input, shape index: {}]
  %s4 = inlined_call_operand.vmem [shape: f32[4,1,8], index: 4, kind: input, shape index: {}]
  %s5 = inlined_call_operand.vmem [shape: bf16[4,32,8], index: 5, kind: input, shape index: {}]
  %s6 = inlined_call_operand.vmem [shape: f32[4,1,8], index: 6, kind: input, shape index: {}]
  %s7 = inlined_call_operand.vmem [shape: bf16[4,32,8], index: 7, kind: input, shape index: {}]
  %s8 = inlined_call_operand.vmem [shape: f32[4,1,8], index: 8, kind: input, shape index: {}]
  %s9 = inlined_call_operand.vmem [shape: bf16[4,8,32], index: 9, kind: input, shape index: {}]
  %s10 = inlined_call_operand.vmem [shape: f32[1,32], index: 10, kind: input, shape index: {}]
  %s11 = inlined_call_operand.hbm [shape: f32[2,8,32], index: 11, kind: output, shape index: {}]
  %s12 = sld [smem:[#allocation0]]
  $region81: #{tpu_custom_call.1} parent=0
    _
  %s14 = ssub.s32 1, %s12
  %s15 = scalar_select 0, %s14, %s12
  $region1: #{tpu_custom_call.1} parent=0
    #allocation4 [shape = 'u8[8192]{0}', space=vmem, size = 0x2000, scoped, tag = 'output window, operand 0']
    #allocation5 [shape = 's32[2]{0}', space=sflag, size = 0x8, scoped, tag = 'scoped memory for tpu_custom_call.1']
    %16 = vsyncpa [#allocation5], 0
    %s17 = scalar_lea.sflag [#allocation5], 1
    %18 = vsyncpa %s17, 0
    loop: start=0, step=1, limit=4
    $region2: #{tpu_custom_call.1} parent=1 // loop_pre_header
      _
    $region3: #{tpu_custom_call.1} parent=1 // loop_header
      %s20 = sphi 0, %s24
      %p21 = scmp.ge.s32.totalorder %s20, 4
      %s27 = sphi 0, %s39
      %s28 = sphi 0, %s35
      %s29 = sphi 0, %s27
      %s30 = sphi 0, %s28
      %s31 = sphi 0, %s29
      %s32 = sphi 0, %s30
      %s44 = sphi 0, %s46
      %s47 = sphi 0, %s44
      %s48 = sphi 0, %s47
      %s64 = sphi 0, %s48
      %s70 = sphi 0, %s72
      %s73 = sphi 0, %s70
      %s74 = sphi 0, %s73
      %s90 = sphi 0, %s74
      %s96 = sphi 0, %s98
      %s99 = sphi 0, %s96
      %s100 = sphi 0, %s99
      %s116 = sphi 0, %s100
      %s120 = sphi 0, %s120
      %s122 = sphi 0, %s120
      %s123 = sphi 0, %s122
      %s137 = sphi 0, %s123
      %s141 = sphi 0, %s141
      %s143 = sphi 0, %s141
      %s144 = sphi 0, %s143
      %s158 = sphi 0, %s144
      %s162 = sphi 0, %s162
      %s164 = sphi 0, %s162
      %s165 = sphi 0, %s164
      %s179 = sphi 0, %s165
      %s183 = sphi 0, %s183
      %s185 = sphi 0, %s183
      %s186 = sphi 0, %s185
      %s200 = sphi 0, %s186
      %s204 = sphi 0, %s204
      %s206 = sphi 0, %s204
      %s207 = sphi 0, %s206
      %s221 = sphi 0, %s207
      %s225 = sphi 0, %s225
      %s227 = sphi 0, %s225
      %s228 = sphi 0, %s227
      %s242 = sphi 0, %s228
      %s246 = sphi 0, %s246
      %s248 = sphi 0, %s246
      %s249 = sphi 0, %s248
      %s263 = sphi 0, %s249
      %s267 = sphi 0, %s267
      %s269 = sphi 0, %s267
      %s270 = sphi 0, %s269
      %s284 = sphi 0, %s270
      %s292 = sphi 0, %s294
      %s295 = sphi 0, %s292
      %s296 = sphi 0, %s295
      %s312 = sphi 0, %s296
    $region4: #{tpu_custom_call.1} parent=1 // loop_header_branch
      %23 = sbr.rel (%p21) target = $region8
    $region5: #{tpu_custom_call.1} parent=1 // loop_body
      %s25 = ssub.s32 %s20, 1
      %s26 = ssub.s32 %s20, 2
      %s33 = sadd.s32 1, %s28
      %p34 = scmp.ge.s32.totalorder %s33, 1
      %s35 = scalar_select %p34, 0, %s33
      %s36 = sadd.s32 1, %s27
      %s37 = scalar_select %p34, %s36, %s27
      %p38 = scmp.ge.s32.totalorder %s37, 2
      %s39 = scalar_select %p38, 0, %s37
      %s40 = ssub.s32 %s27, %s39
      %s41 = ssub.s32 %s28, %s35
      %s42 = sor.u32 %s40, %s41
      %p43 = scmp.eq.s32.totalorder %s42, 0
      %s45 = sadd.s32 %s44, 1
      %s46 = scalar_select %p43, %s44, %s45
      %p49 = pneg %p43
      %p50 = scmp.eq.s32.totalorder %s20, 1
      %p51 = por %p49, %p50
      %p52 = scmp.ne.s32.totalorder %s44, %s47
      %p53 = scmp.eq.s32.totalorder %s20, 0
      %p54 = por %p52, %p53
      %p55 = scmp.ne.s32.totalorder %s44, %s47
      %p56 = scmp.eq.s32.totalorder %s25, 1
      %p57 = por %p55, %p56
      %p58 = scmp.ne.s32.totalorder %s47, %s48
      %p59 = scmp.eq.s32.totalorder %s25, 0
      %p60 = por %p58, %p59
      %p61 = scmp.ne.s32.totalorder %s47, %s48
      %p62 = scmp.eq.s32.totalorder %s26, 1
      %p63 = por %p61, %p62
      %p65 = scmp.ne.s32.totalorder %s48, %s64
      %p66 = scmp.eq.s32.totalorder %s26, 0
      %p67 = por %p65, %p66
      %s68 = ssub.s32 %s27, %s39
      %p69 = scmp.eq.s32.totalorder %s68, 0
      %s71 = sadd.s32 %s70, 1
      %s72 = scalar_select %p69, %s70, %s71
      %p75 = pneg %p69
      %p76 = scmp.eq.s32.totalorder %s20, 1
      %p77 = por %p75, %p76
      %p78 = scmp.ne.s32.totalorder %s70, %s73
      %p79 = scmp.eq.s32.totalorder %s20, 0
      %p80 = por %p78, %p79
      %p81 = scmp.ne.s32.totalorder %s70, %s73
      %p82 = scmp.eq.s32.totalorder %s25, 1
      %p83 = por %p81, %p82
      %p84 = scmp.ne.s32.totalorder %s73, %s74
      %p85 = scmp.eq.s32.totalorder %s25, 0
      %p86 = por %p84, %p85
      %p87 = scmp.ne.s32.totalorder %s73, %s74
      %p88 = scmp.eq.s32.totalorder %s26, 1
      %p89 = por %p87, %p88
      %p91 = scmp.ne.s32.totalorder %s74, %s90
      %p92 = scmp.eq.s32.totalorder %s26, 0
      %p93 = por %p91, %p92
      %s94 = ssub.s32 %s27, %s39
      %p95 = scmp.eq.s32.totalorder %s94, 0
      %s97 = sadd.s32 %s96, 1
      %s98 = scalar_select %p95, %s96, %s97
      %p101 = pneg %p95
      %p102 = scmp.eq.s32.totalorder %s20, 1
      %p103 = por %p101, %p102
      %p104 = scmp.ne.s32.totalorder %s96, %s99
      %p105 = scmp.eq.s32.totalorder %s20, 0
      %p106 = por %p104, %p105
      %p107 = scmp.ne.s32.totalorder %s96, %s99
      %p108 = scmp.eq.s32.totalorder %s25, 1
      %p109 = por %p107, %p108
      %p110 = scmp.ne.s32.totalorder %s99, %s100
      %p111 = scmp.eq.s32.totalorder %s25, 0
      %p112 = por %p110, %p111
      %p113 = scmp.ne.s32.totalorder %s99, %s100
      %p114 = scmp.eq.s32.totalorder %s26, 1
      %p115 = por %p113, %p114
      %p117 = scmp.ne.s32.totalorder %s100, %s116
      %p118 = scmp.eq.s32.totalorder %s26, 0
      %p119 = por %p117, %p118
      %s121 = sadd.s32 %s120, 1
      %p124 = scmp.eq.s32.totalorder %s20, 1
      %p125 = scmp.ne.s32.totalorder %s120, %s122
      %p126 = scmp.eq.s32.totalorder %s20, 0
      %p127 = por %p125, %p126
      %p128 = scmp.ne.s32.totalorder %s120, %s122
      %p129 = scmp.eq.s32.totalorder %s25, 1
      %p130 = por %p128, %p129
      %p131 = scmp.ne.s32.totalorder %s122, %s123
      %p132 = scmp.eq.s32.totalorder %s25, 0
      %p133 = por %p131, %p132
      %p134 = scmp.ne.s32.totalorder %s122, %s123
      %p135 = scmp.eq.s32.totalorder %s26, 1
      %p136 = por %p134, %p135
      %p138 = scmp.ne.s32.totalorder %s123, %s137
      %p139 = scmp.eq.s32.totalorder %s26, 0
      %p140 = por %p138, %p139
      %s142 = sadd.s32 %s141, 1
      %p145 = scmp.eq.s32.totalorder %s20, 1
      %p146 = scmp.ne.s32.totalorder %s141, %s143
      %p147 = scmp.eq.s32.totalorder %s20, 0
      %p148 = por %p146, %p147
      %p149 = scmp.ne.s32.totalorder %s141, %s143
      %p150 = scmp.eq.s32.totalorder %s25, 1
      %p151 = por %p149, %p150
      %p152 = scmp.ne.s32.totalorder %s143, %s144
      %p153 = scmp.eq.s32.totalorder %s25, 0
      %p154 = por %p152, %p153
      %p155 = scmp.ne.s32.totalorder %s143, %s144
      %p156 = scmp.eq.s32.totalorder %s26, 1
      %p157 = por %p155, %p156
      %p159 = scmp.ne.s32.totalorder %s144, %s158
      %p160 = scmp.eq.s32.totalorder %s26, 0
      %p161 = por %p159, %p160
      %s163 = sadd.s32 %s162, 1
      %p166 = scmp.eq.s32.totalorder %s20, 1
      %p167 = scmp.ne.s32.totalorder %s162, %s164
      %p168 = scmp.eq.s32.totalorder %s20, 0
      %p169 = por %p167, %p168
      %p170 = scmp.ne.s32.totalorder %s162, %s164
      %p171 = scmp.eq.s32.totalorder %s25, 1
      %p172 = por %p170, %p171
      %p173 = scmp.ne.s32.totalorder %s164, %s165
      %p174 = scmp.eq.s32.totalorder %s25, 0
      %p175 = por %p173, %p174
      %p176 = scmp.ne.s32.totalorder %s164, %s165
      %p177 = scmp.eq.s32.totalorder %s26, 1
      %p178 = por %p176, %p177
      %p180 = scmp.ne.s32.totalorder %s165, %s179
      %p181 = scmp.eq.s32.totalorder %s26, 0
      %p182 = por %p180, %p181
      %s184 = sadd.s32 %s183, 1
      %p187 = scmp.eq.s32.totalorder %s20, 1
      %p188 = scmp.ne.s32.totalorder %s183, %s185
      %p189 = scmp.eq.s32.totalorder %s20, 0
      %p190 = por %p188, %p189
      %p191 = scmp.ne.s32.totalorder %s183, %s185
      %p192 = scmp.eq.s32.totalorder %s25, 1
      %p193 = por %p191, %p192
      %p194 = scmp.ne.s32.totalorder %s185, %s186
      %p195 = scmp.eq.s32.totalorder %s25, 0
      %p196 = por %p194, %p195
      %p197 = scmp.ne.s32.totalorder %s185, %s186
      %p198 = scmp.eq.s32.totalorder %s26, 1
      %p199 = por %p197, %p198
      %p201 = scmp.ne.s32.totalorder %s186, %s200
      %p202 = scmp.eq.s32.totalorder %s26, 0
      %p203 = por %p201, %p202
      %s205 = sadd.s32 %s204, 1
      %p208 = scmp.eq.s32.totalorder %s20, 1
      %p209 = scmp.ne.s32.totalorder %s204, %s206
      %p210 = scmp.eq.s32.totalorder %s20, 0
      %p211 = por %p209, %p210
      %p212 = scmp.ne.s32.totalorder %s204, %s206
      %p213 = scmp.eq.s32.totalorder %s25, 1
      %p214 = por %p212, %p213
      %p215 = scmp.ne.s32.totalorder %s206, %s207
      %p216 = scmp.eq.s32.totalorder %s25, 0
      %p217 = por %p215, %p216
      %p218 = scmp.ne.s32.totalorder %s206, %s207
      %p219 = scmp.eq.s32.totalorder %s26, 1
      %p220 = por %p218, %p219
      %p222 = scmp.ne.s32.totalorder %s207, %s221
      %p223 = scmp.eq.s32.totalorder %s26, 0
      %p224 = por %p222, %p223
      %s226 = sadd.s32 %s225, 1
      %p229 = scmp.eq.s32.totalorder %s20, 1
      %p230 = scmp.ne.s32.totalorder %s225, %s227
      %p231 = scmp.eq.s32.totalorder %s20, 0
      %p232 = por %p230, %p231
      %p233 = scmp.ne.s32.totalorder %s225, %s227
      %p234 = scmp.eq.s32.totalorder %s25, 1
      %p235 = por %p233, %p234
      %p236 = scmp.ne.s32.totalorder %s227, %s228
      %p237 = scmp.eq.s32.totalorder %s25, 0
      %p238 = por %p236, %p237
      %p239 = scmp.ne.s32.totalorder %s227, %s228
      %p240 = scmp.eq.s32.totalorder %s26, 1
      %p241 = por %p239, %p240
      %p243 = scmp.ne.s32.totalorder %s228, %s242
      %p244 = scmp.eq.s32.totalorder %s26, 0
      %p245 = por %p243, %p244
      %s247 = sadd.s32 %s246, 1
      %p250 = scmp.eq.s32.totalorder %s20, 1
      %p251 = scmp.ne.s32.totalorder %s246, %s248
      %p252 = scmp.eq.s32.totalorder %s20, 0
      %p253 = por %p251, %p252
      %p254 = scmp.ne.s32.totalorder %s246, %s248
      %p255 = scmp.eq.s32.totalorder %s25, 1
      %p256 = por %p254, %p255
      %p257 = scmp.ne.s32.totalorder %s248, %s249
      %p258 = scmp.eq.s32.totalorder %s25, 0
      %p259 = por %p257, %p258
      %p260 = scmp.ne.s32.totalorder %s248, %s249
      %p261 = scmp.eq.s32.totalorder %s26, 1
      %p262 = por %p260, %p261
      %p264 = scmp.ne.s32.totalorder %s249, %s263
      %p265 = scmp.eq.s32.totalorder %s26, 0
      %p266 = por %p264, %p265
      %s268 = sadd.s32 %s267, 1
      %p271 = scmp.eq.s32.totalorder %s20, 1
      %p272 = scmp.ne.s32.totalorder %s267, %s269
      %p273 = scmp.eq.s32.totalorder %s20, 0
      %p274 = por %p272, %p273
      %p275 = scmp.ne.s32.totalorder %s267, %s269
      %p276 = scmp.eq.s32.totalorder %s25, 1
      %p277 = por %p275, %p276
      %p278 = scmp.ne.s32.totalorder %s269, %s270
      %p279 = scmp.eq.s32.totalorder %s25, 0
      %p280 = por %p278, %p279
      %p281 = scmp.ne.s32.totalorder %s269, %s270
      %p282 = scmp.eq.s32.totalorder %s26, 1
      %p283 = por %p281, %p282
      %p285 = scmp.ne.s32.totalorder %s270, %s284
      %p286 = scmp.eq.s32.totalorder %s26, 0
      %p287 = por %p285, %p286
      %s288 = ssub.s32 %s27, %s39
      %s289 = ssub.s32 %s28, %s35
      %s290 = sor.u32 %s288, %s289
      %p291 = scmp.eq.s32.totalorder %s290, 0
      %s293 = sadd.s32 %s292, 1
      %s294 = scalar_select %p291, %s292, %s293
      %p297 = pneg %p291
      %p298 = scmp.eq.s32.totalorder %s20, 1
      %p299 = por %p297, %p298
      %p300 = scmp.ne.s32.totalorder %s292, %s295
      %p301 = scmp.eq.s32.totalorder %s20, 0
      %p302 = por %p300, %p301
      %p303 = scmp.ne.s32.totalorder %s292, %s295
      %p304 = scmp.eq.s32.totalorder %s25, 1
      %p305 = por %p303, %p304
      %p306 = scmp.ne.s32.totalorder %s295, %s296
      %p307 = scmp.eq.s32.totalorder %s25, 0
      %p308 = por %p306, %p307
      %p309 = scmp.ne.s32.totalorder %s295, %s296
      %p310 = scmp.eq.s32.totalorder %s26, 1
      %p311 = por %p309, %p310
      %p313 = scmp.ne.s32.totalorder %s296, %s312
      %p314 = scmp.eq.s32.totalorder %s26, 0
      %p315 = por %p313, %p314
      %p316 = scmp.le.s32.totalorder 1, %s20
      %p317 = scmp.lt.s32.totalorder %s20, 3
      %p318 = pnand %p316, %p317
      %p319 = pneg %p318
      // Predicated region
      $region9: #{tpu_custom_call.1} parent=5 // pred_check
        _
      $region10: #{tpu_custom_call.1} parent=5 // pred_check_branch
        %321 = sbr.rel (%p318) target = $region12
      $region11: #{tpu_custom_call.1} parent=5 // pred_region
        %s322 = ssub.s32 %s20, 1
        // Predicated region
        $region13: #{tpu_custom_call.1} parent=11 // pred_check
          %p323 = pneg %p133
        $region14: #{tpu_custom_call.1} parent=11 // pred_check_branch
          %325 = sbr.rel (%p323) target = $region16
        $region15: #{tpu_custom_call.1} parent=11 // pred_region
          _
        $region16: #{tpu_custom_call.1} parent=11 // pred_fallthru
          _
        // Predicated region
        $region17: #{tpu_custom_call.1} parent=11 // pred_check
          %p326 = pneg %p154
        $region18: #{tpu_custom_call.1} parent=11 // pred_check_branch
          %328 = sbr.rel (%p326) target = $region20
        $region19: #{tpu_custom_call.1} parent=11 // pred_region
          _
        $region20: #{tpu_custom_call.1} parent=11 // pred_fallthru
          _
        // Predicated region
        $region21: #{tpu_custom_call.1} parent=11 // pred_check
          %p329 = pneg %p175
        $region22: #{tpu_custom_call.1} parent=11 // pred_check_branch
          %331 = sbr.rel (%p329) target = $region24
        $region23: #{tpu_custom_call.1} parent=11 // pred_region
          _
        $region24: #{tpu_custom_call.1} parent=11 // pred_fallthru
          _
        // Predicated region
        $region25: #{tpu_custom_call.1} parent=11 // pred_check
          %p332 = pneg %p196
        $region26: #{tpu_custom_call.1} parent=11 // pred_check_branch
          %334 = sbr.rel (%p332) target = $region28
        $region27: #{tpu_custom_call.1} parent=11 // pred_region
          _
        $region28: #{tpu_custom_call.1} parent=11 // pred_fallthru
          _
        // Predicated region
        $region29: #{tpu_custom_call.1} parent=11 // pred_check
          %p335 = pneg %p217
        $region30: #{tpu_custom_call.1} parent=11 // pred_check_branch
          %337 = sbr.rel (%p335) target = $region32
        $region31: #{tpu_custom_call.1} parent=11 // pred_region
          _
        $region32: #{tpu_custom_call.1} parent=11 // pred_fallthru
          _
        // Predicated region
        $region33: #{tpu_custom_call.1} parent=11 // pred_check
          %p338 = pneg %p238
        $region34: #{tpu_custom_call.1} parent=11 // pred_check_branch
          %340 = sbr.rel (%p338) target = $region36
        $region35: #{tpu_custom_call.1} parent=11 // pred_region
          _
        $region36: #{tpu_custom_call.1} parent=11 // pred_fallthru
          _
        // Predicated region
        $region37: #{tpu_custom_call.1} parent=11 // pred_check
          %p341 = pneg %p259
        $region38: #{tpu_custom_call.1} parent=11 // pred_check_branch
          %343 = sbr.rel (%p341) target = $region40
        $region39: #{tpu_custom_call.1} parent=11 // pred_region
          _
        $region40: #{tpu_custom_call.1} parent=11 // pred_fallthru
          _
        // Predicated region
        $region41: #{tpu_custom_call.1} parent=11 // pred_check
          %p344 = pneg %p280
        $region42: #{tpu_custom_call.1} parent=11 // pred_check_branch
          %346 = sbr.rel (%p344) target = $region44
        $region43: #{tpu_custom_call.1} parent=11 // pred_region
          _
        $region44: #{tpu_custom_call.1} parent=11 // pred_fallthru
          _
      $region12: #{tpu_custom_call.1} parent=5 // pred_fallthru
        _
      %p347 = scmp.lt.s32.totalorder %s20, 2
      // Predicated region
      $region45: #{tpu_custom_call.1} parent=5 // pred_check
        %p348 = pneg %p347
      $region46: #{tpu_custom_call.1} parent=5 // pred_check_branch
        %350 = sbr.rel (%p348) target = $region48
      $region47: #{tpu_custom_call.1} parent=5 // pred_region
        // Predicated region
        $region49: #{tpu_custom_call.1} parent=47 // pred_check
          %p351 = pneg %p54
        $region50: #{tpu_custom_call.1} parent=47 // pred_check_branch
          %353 = sbr.rel (%p351) target = $region52
        $region51: #{tpu_custom_call.1} parent=47 // pred_region
          %p354 = scmp.lt.s32.totalorder %s27, 1
          %s355 = scalar_select %p354, %s27, 1
          %p356 = scmp.lt.s32.totalorder %s28, 0
          %s357 = scalar_select %p356, %s28, 0
          %s358 = sadd.s32 %s357, %s355
          %s359 = smul.addr %s358, 8
          %s360 = scalar_lea.vmem %s0, %s359
        $region52: #{tpu_custom_call.1} parent=47 // pred_fallthru
          _
        // Predicated region
        $region53: #{tpu_custom_call.1} parent=47 // pred_check
          %p361 = pneg %p80
        $region54: #{tpu_custom_call.1} parent=47 // pred_check_branch
          %363 = sbr.rel (%p361) target = $region56
        $region55: #{tpu_custom_call.1} parent=47 // pred_region
          %p364 = scmp.lt.s32.totalorder %s27, 1
          %s365 = scalar_select %p364, %s27, 1
          %s366 = smul.addr %s365, 8
          %s367 = scalar_lea.vmem %s1, %s366
        $region56: #{tpu_custom_call.1} parent=47 // pred_fallthru
          _
        // Predicated region
        $region57: #{tpu_custom_call.1} parent=47 // pred_check
          %p368 = pneg %p106
        $region58: #{tpu_custom_call.1} parent=47 // pred_check_branch
          %370 = sbr.rel (%p368) target = $region60
        $region59: #{tpu_custom_call.1} parent=47 // pred_region
          %p371 = scmp.lt.s32.totalorder %s27, 1
          %s372 = scalar_select %p371, %s27, 1
          %s373 = smul.addr %s372, 8
          %s374 = scalar_lea.vmem %s2, %s373
        $region60: #{tpu_custom_call.1} parent=47 // pred_fallthru
          _
      $region48: #{tpu_custom_call.1} parent=5 // pred_fallthru
        _
      %p375 = scmp.le.s32.totalorder 1, %s20
      %p376 = scmp.lt.s32.totalorder %s20, 3
      %p377 = pnand %p375, %p376
      %p378 = pneg %p377
      // Predicated region
      $region61: #{tpu_custom_call.1} parent=5 // pred_check
        _
      $region62: #{tpu_custom_call.1} parent=5 // pred_check_branch
        %380 = sbr.rel (%p377) target = $region64
      $region63: #{tpu_custom_call.1} parent=5 // pred_region
        %s381 = ssub.s32 %s20, 1
        %p382 = scmp.lt.s32.totalorder %s29, 1
        %s383 = scalar_select %p382, %s29, 1
        %p384 = scmp.lt.s32.totalorder %s30, 0
        %s385 = scalar_select %p384, %s30, 0
        %s386 = sadd.s32 %s385, %s383
        %s387 = smul.addr %s386, 8
        %s388 = scalar_lea.vmem %s0, %s387
        %p389 = pneg %p60
        %p390 = pneg %p57
        %p391 = scmp.lt.s32.totalorder %s29, 1
        %s392 = scalar_select %p391, %s29, 1
        %s393 = smul.addr %s392, 8
        %s394 = scalar_lea.vmem %s1, %s393
        %p395 = pneg %p86
        %p396 = pneg %p83
        %p397 = scmp.lt.s32.totalorder %s29, 1
        %s398 = scalar_select %p397, %s29, 1
        %s399 = smul.addr %s398, 8
        %s400 = scalar_lea.vmem %s2, %s399
        %p401 = pneg %p112
        %p402 = pneg %p109
        %p403 = pneg %p133
        %p404 = pneg %p130
        %p405 = pneg %p154
        %p406 = pneg %p151
        %p407 = pneg %p175
        %p408 = pneg %p172
        %p409 = pneg %p196
        %p410 = pneg %p193
        %p411 = pneg %p217
        %p412 = pneg %p214
        %p413 = pneg %p238
        %p414 = pneg %p235
        %p415 = pneg %p259
        %p416 = pneg %p256
        %p417 = pneg %p280
        %p418 = pneg %p277
        %p419 = pneg %p308
        %p420 = pneg %p305
        %s421 = sand.u32 %s295, 1
        %s422 = scalar_lea.sflag [#allocation5], %s421
        %s423 = sand.u32 %s295, 1
        %s424 = smul.addr %s423, 8
        %s425 = scalar_lea.vmem [#allocation4], %s424
        %p426 = scmp.lt.s32.totalorder %s29, 1
        %s427 = scalar_select %p426, %s29, 1
        %p428 = scmp.lt.s32.totalorder %s30, 0
        %s429 = scalar_select %p428, %s30, 0
        %s430 = sadd.s32 %s429, %s427
        %s431 = smul.addr %s430, 8
        %s432 = scalar_lea.vmem %s0, %s431
        %p433 = scmp.lt.s32.totalorder %s29, 1
        %s434 = scalar_select %p433, %s29, 1
        %s435 = smul.addr %s434, 8
        %s436 = scalar_lea.vmem %s1, %s435
        %p437 = scmp.lt.s32.totalorder %s29, 1
        %s438 = scalar_select %p437, %s29, 1
        %s439 = smul.addr %s438, 8
        %s440 = scalar_lea.vmem %s2, %s439
        %p442 = scmp.eq.s32.totalorder %s30, 0
        // Predicated region
        $region65: #{tpu_custom_call.1} parent=63 // pred_check
          %p443 = pneg %p442
        $region66: #{tpu_custom_call.1} parent=63 // pred_check_branch
          %445 = sbr.rel (%p443) target = $region68
        $region67: #{tpu_custom_call.1} parent=63 // pred_region
          %v446 = vld [vmem:[%s436] sm:$0xff]
          %v447 = vpack.c.bf16 %v446, %v446
          %v448 = vld [vmem:[%s440] sm:$0xff]
          %v449 = vpack.c.bf16 %v448, %v448
          %v450 = vld [vmem:[%s5] sm:$0xf]
          %v451 = vld [vmem:[%s5 + $0x4] sm:$0xf]
          %v452 = vld [vmem:[%s5 + $0x8] sm:$0xf]
          %v453 = vld [vmem:[%s5 + $0xc] sm:$0xf]
          %v454 = vld [vmem:[%s5 + $0x10] sm:$0xf]
          %v455 = vld [vmem:[%s5 + $0x14] sm:$0xf]
          %v456 = vld [vmem:[%s5 + $0x18] sm:$0xf]
          %v457 = vld [vmem:[%s5 + $0x1c] sm:$0xf]
          %v458 = vld [vmem:[%s5 + $0x20] sm:$0xf]
          %v459 = vld [vmem:[%s5 + $0x24] sm:$0xf]
          %v460 = vld [vmem:[%s5 + $0x28] sm:$0xf]
          %v461 = vld [vmem:[%s5 + $0x2c] sm:$0xf]
          %v462 = vld [vmem:[%s5 + $0x30] sm:$0xf]
          %v463 = vld [vmem:[%s5 + $0x34] sm:$0xf]
          %v464 = vld [vmem:[%s5 + $0x38] sm:$0xf]
          %v465 = vld [vmem:[%s5 + $0x3c] sm:$0xf]
          %v466 = vld [vmem:[%s6] sm:$0x1]
          %v467 = vld [vmem:[%s6 + $0x1] sm:$0x1]
          %v468 = vld [vmem:[%s6 + $0x2] sm:$0x1]
          %v469 = vld [vmem:[%s6 + $0x3] sm:$0x1]
          %v474 = vlaneseq
          %v475 = vshrl.u32 %v474, 7
          %v476 = vsub.s32 0, %v475
          %v477 = vrot.slane %v466, %v476
          %v478 = vlaneseq
          %v479 = vshrl.u32 %v478, 7
          %v480 = vsub.s32 0, %v479
          %v481 = vrot.slane %v467, %v480
          %v482 = vlaneseq
          %v483 = vshrl.u32 %v482, 7
          %v484 = vsub.s32 0, %v483
          %v485 = vrot.slane %v468, %v484
          %v486 = vlaneseq
          %v487 = vshrl.u32 %v486, 7
          %v488 = vsub.s32 0, %v487
          %v489 = vrot.slane %v469, %v488
          %v498 = vunpack.c.l.b16 %v450
          %v499 = vunpack.c.l.b16 %v451
          %v500 = vunpack.c.l.b16 %v452
          %v501 = vunpack.c.l.b16 %v453
          %v502 = vpack.c.b16 %v499, %v498
          %v503 = vpack.c.b16 %v501, %v500
          %vm506 = vcmask 261120
          %v508 = vsel %vm506, %v447, 0
          %510 = vmatprep.subr.bf16.mxu0 0
          %511 = vmatpush1.bf16.msra.mxu0 0
          %512 = vmatprep.subr.bf16.mxu0 0
          %513 = vmatpush1.bf16.msra.mxu0 0
          %514 = vmatprep.subr.bf16.mxu0 0
          %515 = vmatpush1.bf16.msra.mxu0 0
          %516 = vmatprep.subr.bf16.mxu0 0
          %517 = vmatpush1.bf16.msra.mxu0 0
          %518 = vmatprep.subr.bf16.mxu0 0
          %519 = vmatpush1.bf16.msra.mxu0 0
          %520 = vmatprep.subr.bf16.mxu0 0
          %521 = vmatpush1.bf16.msra.mxu0 0
          %522 = vmatprep.subr.bf16.mxu0 0
          %523 = vmatpush1.bf16.msra.mxu0 %v503
          %524 = vmatprep.subr.bf16.mxu0 0
          %525 = vmatpush1.bf16.msra.mxu0 %v502
          %526 = vmatprep.subr.bf16.mxu0 0
          %527 = vmatpush2.bf16.msra.mxu0 0
          %528 = vmatprep.subr.bf16.mxu0 0
          %529 = vmatpush2.bf16.msra.mxu0 0
          %530 = vmatprep.subr.bf16.mxu0 0
          %531 = vmatpush2.bf16.msra.mxu0 0
          %532 = vmatprep.subr.bf16.mxu0 0
          %533 = vmatpush2.bf16.msra.mxu0 0
          %534 = vmatprep.subr.bf16.mxu0 0
          %535 = vmatpush2.bf16.msra.mxu0 0
          %536 = vmatprep.subr.bf16.mxu0 0
          %537 = vmatpush2.bf16.msra.mxu0 0
          %538 = vmatprep.subr.bf16.mxu0 0
          %539 = vmatpush2.bf16.msra.mxu0 0
          %540 = vmatprep.subr.bf16.mxu0 0
          %541 = vmatpush2.bf16.msra.mxu0 0
          %542 = vmatprep.mubr.bf16.mxu0 0
          %543 = vmatmul.mubr.bf16.gmra.mxu0 %v508
          %v544 = vpop.f32.mrf.mxu0
          %v545 = vadd.f32 %v477, %v544
          %v546 = vpop.f32.mrf.mxu0
          %v547 = vpop.f32.mrf.mxu0
          %v548 = vpop.f32.mrf.mxu0
          %549 = vdwg.mxu0
          %v554 = vunpack.c.l.b16 %v454
          %v555 = vunpack.c.l.b16 %v455
          %v556 = vunpack.c.l.b16 %v456
          %v557 = vunpack.c.l.b16 %v457
          %v558 = vpack.c.b16 %v555, %v554
          %v559 = vpack.c.b16 %v557, %v556
          %562 = vmatprep.subr.bf16.mxu0 0
          %563 = vmatpush1.bf16.msra.mxu0 0
          %564 = vmatprep.subr.bf16.mxu0 0
          %565 = vmatpush1.bf16.msra.mxu0 0
          %566 = vmatprep.subr.bf16.mxu0 0
          %567 = vmatpush1.bf16.msra.mxu0 0
          %568 = vmatprep.subr.bf16.mxu0 0
          %569 = vmatpush1.bf16.msra.mxu0 0
          %570 = vmatprep.subr.bf16.mxu0 0
          %571 = vmatpush1.bf16.msra.mxu0 0
          %572 = vmatprep.subr.bf16.mxu0 0
          %573 = vmatpush1.bf16.msra.mxu0 0
          %574 = vmatprep.subr.bf16.mxu0 0
          %575 = vmatpush1.bf16.msra.mxu0 %v559
          %576 = vmatprep.subr.bf16.mxu0 0
          %577 = vmatpush1.bf16.msra.mxu0 %v558
          %578 = vmatprep.subr.bf16.mxu0 0
          %579 = vmatpush2.bf16.msra.mxu0 0
          %580 = vmatprep.subr.bf16.mxu0 0
          %581 = vmatpush2.bf16.msra.mxu0 0
          %582 = vmatprep.subr.bf16.mxu0 0
          %583 = vmatpush2.bf16.msra.mxu0 0
          %584 = vmatprep.subr.bf16.mxu0 0
          %585 = vmatpush2.bf16.msra.mxu0 0
          %586 = vmatprep.subr.bf16.mxu0 0
          %587 = vmatpush2.bf16.msra.mxu0 0
          %588 = vmatprep.subr.bf16.mxu0 0
          %589 = vmatpush2.bf16.msra.mxu0 0
          %590 = vmatprep.subr.bf16.mxu0 0
          %591 = vmatpush2.bf16.msra.mxu0 0
          %592 = vmatprep.subr.bf16.mxu0 0
          %593 = vmatpush2.bf16.msra.mxu0 0
          %594 = vmatprep.mubr.bf16.mxu0 0
          %595 = vmatmul.mubr.bf16.gmra.mxu0 %v508
          %v596 = vpop.f32.mrf.mxu0
          %v597 = vadd.f32 %v481, %v596
          %v598 = vpop.f32.mrf.mxu0
          %v599 = vpop.f32.mrf.mxu0
          %v600 = vpop.f32.mrf.mxu0
          %601 = vdwg.mxu0
          %v606 = vunpack.c.l.b16 %v458
          %v607 = vunpack.c.l.b16 %v459
          %v608 = vunpack.c.l.b16 %v460
          %v609 = vunpack.c.l.b16 %v461
          %v610 = vpack.c.b16 %v607, %v606
          %v611 = vpack.c.b16 %v609, %v608
          %614 = vmatprep.subr.bf16.mxu0 0
          %615 = vmatpush1.bf16.msra.mxu0 0
          %616 = vmatprep.subr.bf16.mxu0 0
          %617 = vmatpush1.bf16.msra.mxu0 0
          %618 = vmatprep.subr.bf16.mxu0 0
          %619 = vmatpush1.bf16.msra.mxu0 0
          %620 = vmatprep.subr.bf16.mxu0 0
          %621 = vmatpush1.bf16.msra.mxu0 0
          %622 = vmatprep.subr.bf16.mxu0 0
          %623 = vmatpush1.bf16.msra.mxu0 0
          %624 = vmatprep.subr.bf16.mxu0 0
          %625 = vmatpush1.bf16.msra.mxu0 0
          %626 = vmatprep.subr.bf16.mxu0 0
          %627 = vmatpush1.bf16.msra.mxu0 %v611
          %628 = vmatprep.subr.bf16.mxu0 0
          %629 = vmatpush1.bf16.msra.mxu0 %v610
          %630 = vmatprep.subr.bf16.mxu0 0
          %631 = vmatpush2.bf16.msra.mxu0 0
          %632 = vmatprep.subr.bf16.mxu0 0
          %633 = vmatpush2.bf16.msra.mxu0 0
          %634 = vmatprep.subr.bf16.mxu0 0
          %635 = vmatpush2.bf16.msra.mxu0 0
          %636 = vmatprep.subr.bf16.mxu0 0
          %637 = vmatpush2.bf16.msra.mxu0 0
          %638 = vmatprep.subr.bf16.mxu0 0
          %639 = vmatpush2.bf16.msra.mxu0 0
          %640 = vmatprep.subr.bf16.mxu0 0
          %641 = vmatpush2.bf16.msra.mxu0 0
          %642 = vmatprep.subr.bf16.mxu0 0
          %643 = vmatpush2.bf16.msra.mxu0 0
          %644 = vmatprep.subr.bf16.mxu0 0
          %645 = vmatpush2.bf16.msra.mxu0 0
          %646 = vmatprep.mubr.bf16.mxu0 0
          %647 = vmatmul.mubr.bf16.gmra.mxu0 %v508
          %v648 = vpop.f32.mrf.mxu0
          %v649 = vadd.f32 %v485, %v648
          %v650 = vpop.f32.mrf.mxu0
          %v651 = vpop.f32.mrf.mxu0
          %v652 = vpop.f32.mrf.mxu0
          %653 = vdwg.mxu0
          %v658 = vunpack.c.l.b16 %v462
          %v659 = vunpack.c.l.b16 %v463
          %v660 = vunpack.c.l.b16 %v464
          %v661 = vunpack.c.l.b16 %v465
          %v662 = vpack.c.b16 %v659, %v658
          %v663 = vpack.c.b16 %v661, %v660
          %666 = vmatprep.subr.bf16.mxu0 0
          %667 = vmatpush1.bf16.msra.mxu0 0
          %668 = vmatprep.subr.bf16.mxu0 0
          %669 = vmatpush1.bf16.msra.mxu0 0
          %670 = vmatprep.subr.bf16.mxu0 0
          %671 = vmatpush1.bf16.msra.mxu0 0
          %672 = vmatprep.subr.bf16.mxu0 0
          %673 = vmatpush1.bf16.msra.mxu0 0
          %674 = vmatprep.subr.bf16.mxu0 0
          %675 = vmatpush1.bf16.msra.mxu0 0
          %676 = vmatprep.subr.bf16.mxu0 0
          %677 = vmatpush1.bf16.msra.mxu0 0
          %678 = vmatprep.subr.bf16.mxu0 0
          %679 = vmatpush1.bf16.msra.mxu0 %v663
          %680 = vmatprep.subr.bf16.mxu0 0
          %681 = vmatpush1.bf16.msra.mxu0 %v662
          %682 = vmatprep.subr.bf16.mxu0 0
          %683 = vmatpush2.bf16.msra.mxu0 0
          %684 = vmatprep.subr.bf16.mxu0 0
          %685 = vmatpush2.bf16.msra.mxu0 0
          %686 = vmatprep.subr.bf16.mxu0 0
          %687 = vmatpush2.bf16.msra.mxu0 0
          %688 = vmatprep.subr.bf16.mxu0 0
          %689 = vmatpush2.bf16.msra.mxu0 0
          %690 = vmatprep.subr.bf16.mxu0 0
          %691 = vmatpush2.bf16.msra.mxu0 0
          %692 = vmatprep.subr.bf16.mxu0 0
          %693 = vmatpush2.bf16.msra.mxu0 0
          %694 = vmatprep.subr.bf16.mxu0 0
          %695 = vmatpush2.bf16.msra.mxu0 0
          %696 = vmatprep.subr.bf16.mxu0 0
          %697 = vmatpush2.bf16.msra.mxu0 0
          %698 = vmatprep.mubr.bf16.mxu0 0
          %699 = vmatmul.mubr.bf16.gmra.mxu0 %v508
          %v700 = vpop.f32.mrf.mxu0
          %v701 = vadd.f32 %v489, %v700
          %v702 = vpop.f32.mrf.mxu0
          %v703 = vpop.f32.mrf.mxu0
          %v704 = vpop.f32.mrf.mxu0
          %705 = vdwg.mxu0
          %v706 = vld [vmem:[%s7] sm:$0xf]
          %v707 = vld [vmem:[%s7 + $0x4] sm:$0xf]
          %v708 = vld [vmem:[%s7 + $0x8] sm:$0xf]
          %v709 = vld [vmem:[%s7 + $0xc] sm:$0xf]
          %v710 = vld [vmem:[%s7 + $0x10] sm:$0xf]
          %v711 = vld [vmem:[%s7 + $0x14] sm:$0xf]
          %v712 = vld [vmem:[%s7 + $0x18] sm:$0xf]
          %v713 = vld [vmem:[%s7 + $0x1c] sm:$0xf]
          %v714 = vld [vmem:[%s7 + $0x20] sm:$0xf]
          %v715 = vld [vmem:[%s7 + $0x24] sm:$0xf]
          %v716 = vld [vmem:[%s7 + $0x28] sm:$0xf]
          %v717 = vld [vmem:[%s7 + $0x2c] sm:$0xf]
          %v718 = vld [vmem:[%s7 + $0x30] sm:$0xf]
          %v719 = vld [vmem:[%s7 + $0x34] sm:$0xf]
          %v720 = vld [vmem:[%s7 + $0x38] sm:$0xf]
          %v721 = vld [vmem:[%s7 + $0x3c] sm:$0xf]
          %v722 = vld [vmem:[%s8] sm:$0x1]
          %v723 = vld [vmem:[%s8 + $0x1] sm:$0x1]
          %v724 = vld [vmem:[%s8 + $0x2] sm:$0x1]
          %v725 = vld [vmem:[%s8 + $0x3] sm:$0x1]
          %v730 = vlaneseq
          %v731 = vshrl.u32 %v730, 7
          %v732 = vsub.s32 0, %v731
          %v733 = vrot.slane %v722, %v732
          %v734 = vlaneseq
          %v735 = vshrl.u32 %v734, 7
          %v736 = vsub.s32 0, %v735
          %v737 = vrot.slane %v723, %v736
          %v738 = vlaneseq
          %v739 = vshrl.u32 %v738, 7
          %v740 = vsub.s32 0, %v739
          %v741 = vrot.slane %v724, %v740
          %v742 = vlaneseq
          %v743 = vshrl.u32 %v742, 7
          %v744 = vsub.s32 0, %v743
          %v745 = vrot.slane %v725, %v744
          %v754 = vunpack.c.l.b16 %v706
          %v755 = vunpack.c.l.b16 %v707
          %v756 = vunpack.c.l.b16 %v708
          %v757 = vunpack.c.l.b16 %v709
          %v758 = vpack.c.b16 %v755, %v754
          %v759 = vpack.c.b16 %v757, %v756
          %v763 = vsel %vm506, %v449, 0
          %765 = vmatprep.subr.bf16.mxu0 0
          %766 = vmatpush1.bf16.msra.mxu0 0
          %767 = vmatprep.subr.bf16.mxu0 0
          %768 = vmatpush1.bf16.msra.mxu0 0
          %769 = vmatprep.subr.bf16.mxu0 0
          %770 = vmatpush1.bf16.msra.mxu0 0
          %771 = vmatprep.subr.bf16.mxu0 0
          %772 = vmatpush1.bf16.msra.mxu0 0
          %773 = vmatprep.subr.bf16.mxu0 0
          %774 = vmatpush1.bf16.msra.mxu0 0
          %775 = vmatprep.subr.bf16.mxu0 0
          %776 = vmatpush1.bf16.msra.mxu0 0
          %777 = vmatprep.subr.bf16.mxu0 0
          %778 = vmatpush1.bf16.msra.mxu0 %v759
          %779 = vmatprep.subr.bf16.mxu0 0
          %780 = vmatpush1.bf16.msra.mxu0 %v758
          %781 = vmatprep.subr.bf16.mxu0 0
          %782 = vmatpush2.bf16.msra.mxu0 0
          %783 = vmatprep.subr.bf16.mxu0 0
          %784 = vmatpush2.bf16.msra.mxu0 0
          %785 = vmatprep.subr.bf16.mxu0 0
          %786 = vmatpush2.bf16.msra.mxu0 0
          %787 = vmatprep.subr.bf16.mxu0 0
          %788 = vmatpush2.bf16.msra.mxu0 0
          %789 = vmatprep.subr.bf16.mxu0 0
          %790 = vmatpush2.bf16.msra.mxu0 0
          %791 = vmatprep.subr.bf16.mxu0 0
          %792 = vmatpush2.bf16.msra.mxu0 0
          %793 = vmatprep.subr.bf16.mxu0 0
          %794 = vmatpush2.bf16.msra.mxu0 0
          %795 = vmatprep.subr.bf16.mxu0 0
          %796 = vmatpush2.bf16.msra.mxu0 0
          %797 = vmatprep.mubr.bf16.mxu0 0
          %798 = vmatmul.mubr.bf16.gmra.mxu0 %v763
          %v799 = vpop.f32.mrf.mxu0
          %v800 = vadd.f32 %v733, %v799
          %v801 = vpop.f32.mrf.mxu0
          %v802 = vpop.f32.mrf.mxu0
          %v803 = vpop.f32.mrf.mxu0
          %804 = vdwg.mxu0
          %v809 = vunpack.c.l.b16 %v710
          %v810 = vunpack.c.l.b16 %v711
          %v811 = vunpack.c.l.b16 %v712
          %v812 = vunpack.c.l.b16 %v713
          %v813 = vpack.c.b16 %v810, %v809
          %v814 = vpack.c.b16 %v812, %v811
          %817 = vmatprep.subr.bf16.mxu0 0
          %818 = vmatpush1.bf16.msra.mxu0 0
          %819 = vmatprep.subr.bf16.mxu0 0
          %820 = vmatpush1.bf16.msra.mxu0 0
          %821 = vmatprep.subr.bf16.mxu0 0
          %822 = vmatpush1.bf16.msra.mxu0 0
          %823 = vmatprep.subr.bf16.mxu0 0
          %824 = vmatpush1.bf16.msra.mxu0 0
          %825 = vmatprep.subr.bf16.mxu0 0
          %826 = vmatpush1.bf16.msra.mxu0 0
          %827 = vmatprep.subr.bf16.mxu0 0
          %828 = vmatpush1.bf16.msra.mxu0 0
          %829 = vmatprep.subr.bf16.mxu0 0
          %830 = vmatpush1.bf16.msra.mxu0 %v814
          %831 = vmatprep.subr.bf16.mxu0 0
          %832 = vmatpush1.bf16.msra.mxu0 %v813
          %833 = vmatprep.subr.bf16.mxu0 0
          %834 = vmatpush2.bf16.msra.mxu0 0
          %835 = vmatprep.subr.bf16.mxu0 0
          %836 = vmatpush2.bf16.msra.mxu0 0
          %837 = vmatprep.subr.bf16.mxu0 0
          %838 = vmatpush2.bf16.msra.mxu0 0
          %839 = vmatprep.subr.bf16.mxu0 0
          %840 = vmatpush2.bf16.msra.mxu0 0
          %841 = vmatprep.subr.bf16.mxu0 0
          %842 = vmatpush2.bf16.msra.mxu0 0
          %843 = vmatprep.subr.bf16.mxu0 0
          %844 = vmatpush2.bf16.msra.mxu0 0
          %845 = vmatprep.subr.bf16.mxu0 0
          %846 = vmatpush2.bf16.msra.mxu0 0
          %847 = vmatprep.subr.bf16.mxu0 0
          %848 = vmatpush2.bf16.msra.mxu0 0
          %849 = vmatprep.mubr.bf16.mxu0 0
          %850 = vmatmul.mubr.bf16.gmra.mxu0 %v763
          %v851 = vpop.f32.mrf.mxu0
          %v852 = vadd.f32 %v737, %v851
          %v853 = vpop.f32.mrf.mxu0
          %v854 = vpop.f32.mrf.mxu0
          %v855 = vpop.f32.mrf.mxu0
          %856 = vdwg.mxu0
          %v861 = vunpack.c.l.b16 %v714
          %v862 = vunpack.c.l.b16 %v715
          %v863 = vunpack.c.l.b16 %v716
          %v864 = vunpack.c.l.b16 %v717
          %v865 = vpack.c.b16 %v862, %v861
          %v866 = vpack.c.b16 %v864, %v863
          %869 = vmatprep.subr.bf16.mxu0 0
          %870 = vmatpush1.bf16.msra.mxu0 0
          %871 = vmatprep.subr.bf16.mxu0 0
          %872 = vmatpush1.bf16.msra.mxu0 0
          %873 = vmatprep.subr.bf16.mxu0 0
          %874 = vmatpush1.bf16.msra.mxu0 0
          %875 = vmatprep.subr.bf16.mxu0 0
          %876 = vmatpush1.bf16.msra.mxu0 0
          %877 = vmatprep.subr.bf16.mxu0 0
          %878 = vmatpush1.bf16.msra.mxu0 0
          %879 = vmatprep.subr.bf16.mxu0 0
          %880 = vmatpush1.bf16.msra.mxu0 0
          %881 = vmatprep.subr.bf16.mxu0 0
          %882 = vmatpush1.bf16.msra.mxu0 %v866
          %883 = vmatprep.subr.bf16.mxu0 0
          %884 = vmatpush1.bf16.msra.mxu0 %v865
          %885 = vmatprep.subr.bf16.mxu0 0
          %886 = vmatpush2.bf16.msra.mxu0 0
          %887 = vmatprep.subr.bf16.mxu0 0
          %888 = vmatpush2.bf16.msra.mxu0 0
          %889 = vmatprep.subr.bf16.mxu0 0
          %890 = vmatpush2.bf16.msra.mxu0 0
          %891 = vmatprep.subr.bf16.mxu0 0
          %892 = vmatpush2.bf16.msra.mxu0 0
          %893 = vmatprep.subr.bf16.mxu0 0
          %894 = vmatpush2.bf16.msra.mxu0 0
          %895 = vmatprep.subr.bf16.mxu0 0
          %896 = vmatpush2.bf16.msra.mxu0 0
          %897 = vmatprep.subr.bf16.mxu0 0
          %898 = vmatpush2.bf16.msra.mxu0 0
          %899 = vmatprep.subr.bf16.mxu0 0
          %900 = vmatpush2.bf16.msra.mxu0 0
          %901 = vmatprep.mubr.bf16.mxu0 0
          %902 = vmatmul.mubr.bf16.gmra.mxu0 %v763
          %v903 = vpop.f32.mrf.mxu0
          %v904 = vadd.f32 %v741, %v903
          %v905 = vpop.f32.mrf.mxu0
          %v906 = vpop.f32.mrf.mxu0
          %v907 = vpop.f32.mrf.mxu0
          %908 = vdwg.mxu0
          %v913 = vunpack.c.l.b16 %v718
          %v914 = vunpack.c.l.b16 %v719
          %v915 = vunpack.c.l.b16 %v720
          %v916 = vunpack.c.l.b16 %v721
          %v917 = vpack.c.b16 %v914, %v913
          %v918 = vpack.c.b16 %v916, %v915
          %921 = vmatprep.subr.bf16.mxu0 0
          %922 = vmatpush1.bf16.msra.mxu0 0
          %923 = vmatprep.subr.bf16.mxu0 0
          %924 = vmatpush1.bf16.msra.mxu0 0
          %925 = vmatprep.subr.bf16.mxu0 0
          %926 = vmatpush1.bf16.msra.mxu0 0
          %927 = vmatprep.subr.bf16.mxu0 0
          %928 = vmatpush1.bf16.msra.mxu0 0
          %929 = vmatprep.subr.bf16.mxu0 0
          %930 = vmatpush1.bf16.msra.mxu0 0
          %931 = vmatprep.subr.bf16.mxu0 0
          %932 = vmatpush1.bf16.msra.mxu0 0
          %933 = vmatprep.subr.bf16.mxu0 0
          %934 = vmatpush1.bf16.msra.mxu0 %v918
          %935 = vmatprep.subr.bf16.mxu0 0
          %936 = vmatpush1.bf16.msra.mxu0 %v917
          %937 = vmatprep.subr.bf16.mxu0 0
          %938 = vmatpush2.bf16.msra.mxu0 0
          %939 = vmatprep.subr.bf16.mxu0 0
          %940 = vmatpush2.bf16.msra.mxu0 0
          %941 = vmatprep.subr.bf16.mxu0 0
          %942 = vmatpush2.bf16.msra.mxu0 0
          %943 = vmatprep.subr.bf16.mxu0 0
          %944 = vmatpush2.bf16.msra.mxu0 0
          %945 = vmatprep.subr.bf16.mxu0 0
          %946 = vmatpush2.bf16.msra.mxu0 0
          %947 = vmatprep.subr.bf16.mxu0 0
          %948 = vmatpush2.bf16.msra.mxu0 0
          %949 = vmatprep.subr.bf16.mxu0 0
          %950 = vmatpush2.bf16.msra.mxu0 0
          %951 = vmatprep.subr.bf16.mxu0 0
          %952 = vmatpush2.bf16.msra.mxu0 0
          %953 = vmatprep.mubr.bf16.mxu0 0
          %954 = vmatmul.mubr.bf16.gmra.mxu0 %v763
          %v955 = vpop.f32.mrf.mxu0
          %v956 = vadd.f32 %v745, %v955
          %v957 = vpop.f32.mrf.mxu0
          %v958 = vpop.f32.mrf.mxu0
          %v959 = vpop.f32.mrf.mxu0
          %960 = vdwg.mxu0
          %v961 = vpack.c.bf16 %v545, %v545
          %v962 = vpack.c.bf16 %v597, %v597
          %v963 = vpack.c.bf16 %v649, %v649
          %v964 = vpack.c.bf16 %v701, %v701
          %vm965 = vcmask 60416
          %966 = vst.msk [vmem:[#allocation2] sm:$0xf] %vm965, %v961
          %967 = vst.msk [vmem:[#allocation2 + $0x4] sm:$0xf] %vm965, %v962
          %968 = vst.msk [vmem:[#allocation2 + $0x8] sm:$0xf] %vm965, %v963
          %969 = vst.msk [vmem:[#allocation2 + $0xc] sm:$0xf] %vm965, %v964
          %v970 = vpack.c.bf16 %v800, %v800
          %v971 = vpack.c.bf16 %v852, %v852
          %v972 = vpack.c.bf16 %v904, %v904
          %v973 = vpack.c.bf16 %v956, %v956
          %974 = vst.msk [vmem:[#allocation3] sm:$0xf] %vm965, %v970
          %975 = vst.msk [vmem:[#allocation3 + $0x4] sm:$0xf] %vm965, %v971
          %976 = vst.msk [vmem:[#allocation3 + $0x8] sm:$0xf] %vm965, %v972
          %977 = vst.msk [vmem:[#allocation3 + $0xc] sm:$0xf] %vm965, %v973
        $region68: #{tpu_custom_call.1} parent=63 // pred_fallthru
          _
        %v978 = vld [vmem:[%s432] sm:$0xff]
        %v979 = vpack.c.bf16 %v978, %v978
        %v980 = vld [vmem:[%s3] sm:$0xf]
        %v981 = vld [vmem:[%s3 + $0x4] sm:$0xf]
        %v982 = vld [vmem:[%s3 + $0x8] sm:$0xf]
        %v983 = vld [vmem:[%s3 + $0xc] sm:$0xf]
        %v984 = vld [vmem:[%s3 + $0x10] sm:$0xf]
        %v985 = vld [vmem:[%s3 + $0x14] sm:$0xf]
        %v986 = vld [vmem:[%s3 + $0x18] sm:$0xf]
        %v987 = vld [vmem:[%s3 + $0x1c] sm:$0xf]
        %v988 = vld [vmem:[%s3 + $0x20] sm:$0xf]
        %v989 = vld [vmem:[%s3 + $0x24] sm:$0xf]
        %v990 = vld [vmem:[%s3 + $0x28] sm:$0xf]
        %v991 = vld [vmem:[%s3 + $0x2c] sm:$0xf]
        %v992 = vld [vmem:[%s3 + $0x30] sm:$0xf]
        %v993 = vld [vmem:[%s3 + $0x34] sm:$0xf]
        %v994 = vld [vmem:[%s3 + $0x38] sm:$0xf]
        %v995 = vld [vmem:[%s3 + $0x3c] sm:$0xf]
        %v996 = vld [vmem:[%s4] sm:$0x1]
        %v997 = vld [vmem:[%s4 + $0x1] sm:$0x1]
        %v998 = vld [vmem:[%s4 + $0x2] sm:$0x1]
        %v999 = vld [vmem:[%s4 + $0x3] sm:$0x1]
        %v1004 = vlaneseq
        %v1005 = vshrl.u32 %v1004, 7
        %v1006 = vsub.s32 0, %v1005
        %v1007 = vrot.slane %v996, %v1006
        %v1008 = vlaneseq
        %v1009 = vshrl.u32 %v1008, 7
        %v1010 = vsub.s32 0, %v1009
        %v1011 = vrot.slane %v997, %v1010
        %v1012 = vlaneseq
        %v1013 = vshrl.u32 %v1012, 7
        %v1014 = vsub.s32 0, %v1013
        %v1015 = vrot.slane %v998, %v1014
        %v1016 = vlaneseq
        %v1017 = vshrl.u32 %v1016, 7
        %v1018 = vsub.s32 0, %v1017
        %v1019 = vrot.slane %v999, %v1018
        %v1028 = vunpack.c.l.b16 %v980
        %v1029 = vunpack.c.l.b16 %v981
        %v1030 = vunpack.c.l.b16 %v982
        %v1031 = vunpack.c.l.b16 %v983
        %v1032 = vpack.c.b16 %v1029, %v1028
        %v1033 = vpack.c.b16 %v1031, %v1030
        %vm1036 = vcmask 261120
        %v1038 = vsel %vm1036, %v979, 0
        %1040 = vmatprep.subr.bf16.mxu0 0
        %1041 = vmatpush1.bf16.msra.mxu0 0
        %1042 = vmatprep.subr.bf16.mxu0 0
        %1043 = vmatpush1.bf16.msra.mxu0 0
        %1044 = vmatprep.subr.bf16.mxu0 0
        %1045 = vmatpush1.bf16.msra.mxu0 0
        %1046 = vmatprep.subr.bf16.mxu0 0
        %1047 = vmatpush1.bf16.msra.mxu0 0
        %1048 = vmatprep.subr.bf16.mxu0 0
        %1049 = vmatpush1.bf16.msra.mxu0 0
        %1050 = vmatprep.subr.bf16.mxu0 0
        %1051 = vmatpush1.bf16.msra.mxu0 0
        %1052 = vmatprep.subr.bf16.mxu0 0
        %1053 = vmatpush1.bf16.msra.mxu0 %v1033
        %1054 = vmatprep.subr.bf16.mxu0 0
        %1055 = vmatpush1.bf16.msra.mxu0 %v1032
        %1056 = vmatprep.subr.bf16.mxu0 0
        %1057 = vmatpush2.bf16.msra.mxu0 0
        %1058 = vmatprep.subr.bf16.mxu0 0
        %1059 = vmatpush2.bf16.msra.mxu0 0
        %1060 = vmatprep.subr.bf16.mxu0 0
        %1061 = vmatpush2.bf16.msra.mxu0 0
        %1062 = vmatprep.subr.bf16.mxu0 0
        %1063 = vmatpush2.bf16.msra.mxu0 0
        %1064 = vmatprep.subr.bf16.mxu0 0
        %1065 = vmatpush2.bf16.msra.mxu0 0
        %1066 = vmatprep.subr.bf16.mxu0 0
        %1067 = vmatpush2.bf16.msra.mxu0 0
        %1068 = vmatprep.subr.bf16.mxu0 0
        %1069 = vmatpush2.bf16.msra.mxu0 0
        %1070 = vmatprep.subr.bf16.mxu0 0
        %1071 = vmatpush2.bf16.msra.mxu0 0
        %1072 = vmatprep.mubr.bf16.mxu0 0
        %1073 = vmatmul.mubr.bf16.gmra.mxu0 %v1038
        %v1074 = vpop.f32.mrf.mxu0
        %v1075 = vadd.f32 %v1007, %v1074
        %v1076 = vpop.f32.mrf.mxu0
        %v1077 = vpop.f32.mrf.mxu0
        %v1078 = vpop.f32.mrf.mxu0
        %1079 = vdwg.mxu0
        %v1084 = vunpack.c.l.b16 %v984
        %v1085 = vunpack.c.l.b16 %v985
        %v1086 = vunpack.c.l.b16 %v986
        %v1087 = vunpack.c.l.b16 %v987
        %v1088 = vpack.c.b16 %v1085, %v1084
        %v1089 = vpack.c.b16 %v1087, %v1086
        %1092 = vmatprep.subr.bf16.mxu0 0
        %1093 = vmatpush1.bf16.msra.mxu0 0
        %1094 = vmatprep.subr.bf16.mxu0 0
        %1095 = vmatpush1.bf16.msra.mxu0 0
        %1096 = vmatprep.subr.bf16.mxu0 0
        %1097 = vmatpush1.bf16.msra.mxu0 0
        %1098 = vmatprep.subr.bf16.mxu0 0
        %1099 = vmatpush1.bf16.msra.mxu0 0
        %1100 = vmatprep.subr.bf16.mxu0 0
        %1101 = vmatpush1.bf16.msra.mxu0 0
        %1102 = vmatprep.subr.bf16.mxu0 0
        %1103 = vmatpush1.bf16.msra.mxu0 0
        %1104 = vmatprep.subr.bf16.mxu0 0
        %1105 = vmatpush1.bf16.msra.mxu0 %v1089
        %1106 = vmatprep.subr.bf16.mxu0 0
        %1107 = vmatpush1.bf16.msra.mxu0 %v1088
        %1108 = vmatprep.subr.bf16.mxu0 0
        %1109 = vmatpush2.bf16.msra.mxu0 0
        %1110 = vmatprep.subr.bf16.mxu0 0
        %1111 = vmatpush2.bf16.msra.mxu0 0
        %1112 = vmatprep.subr.bf16.mxu0 0
        %1113 = vmatpush2.bf16.msra.mxu0 0
        %1114 = vmatprep.subr.bf16.mxu0 0
        %1115 = vmatpush2.bf16.msra.mxu0 0
        %1116 = vmatprep.subr.bf16.mxu0 0
        %1117 = vmatpush2.bf16.msra.mxu0 0
        %1118 = vmatprep.subr.bf16.mxu0 0
        %1119 = vmatpush2.bf16.msra.mxu0 0
        %1120 = vmatprep.subr.bf16.mxu0 0
        %1121 = vmatpush2.bf16.msra.mxu0 0
        %1122 = vmatprep.subr.bf16.mxu0 0
        %1123 = vmatpush2.bf16.msra.mxu0 0
        %1124 = vmatprep.mubr.bf16.mxu0 0
        %1125 = vmatmul.mubr.bf16.gmra.mxu0 %v1038
        %v1126 = vpop.f32.mrf.mxu0
        %v1127 = vadd.f32 %v1011, %v1126
        %v1128 = vpop.f32.mrf.mxu0
        %v1129 = vpop.f32.mrf.mxu0
        %v1130 = vpop.f32.mrf.mxu0
        %1131 = vdwg.mxu0
        %v1136 = vunpack.c.l.b16 %v988
        %v1137 = vunpack.c.l.b16 %v989
        %v1138 = vunpack.c.l.b16 %v990
        %v1139 = vunpack.c.l.b16 %v991
        %v1140 = vpack.c.b16 %v1137, %v1136
        %v1141 = vpack.c.b16 %v1139, %v1138
        %1144 = vmatprep.subr.bf16.mxu0 0
        %1145 = vmatpush1.bf16.msra.mxu0 0
        %1146 = vmatprep.subr.bf16.mxu0 0
        %1147 = vmatpush1.bf16.msra.mxu0 0
        %1148 = vmatprep.subr.bf16.mxu0 0
        %1149 = vmatpush1.bf16.msra.mxu0 0
        %1150 = vmatprep.subr.bf16.mxu0 0
        %1151 = vmatpush1.bf16.msra.mxu0 0
        %1152 = vmatprep.subr.bf16.mxu0 0
        %1153 = vmatpush1.bf16.msra.mxu0 0
        %1154 = vmatprep.subr.bf16.mxu0 0
        %1155 = vmatpush1.bf16.msra.mxu0 0
        %1156 = vmatprep.subr.bf16.mxu0 0
        %1157 = vmatpush1.bf16.msra.mxu0 %v1141
        %1158 = vmatprep.subr.bf16.mxu0 0
        %1159 = vmatpush1.bf16.msra.mxu0 %v1140
        %1160 = vmatprep.subr.bf16.mxu0 0
        %1161 = vmatpush2.bf16.msra.mxu0 0
        %1162 = vmatprep.subr.bf16.mxu0 0
        %1163 = vmatpush2.bf16.msra.mxu0 0
        %1164 = vmatprep.subr.bf16.mxu0 0
        %1165 = vmatpush2.bf16.msra.mxu0 0
        %1166 = vmatprep.subr.bf16.mxu0 0
        %1167 = vmatpush2.bf16.msra.mxu0 0
        %1168 = vmatprep.subr.bf16.mxu0 0
        %1169 = vmatpush2.bf16.msra.mxu0 0
        %1170 = vmatprep.subr.bf16.mxu0 0
        %1171 = vmatpush2.bf16.msra.mxu0 0
        %1172 = vmatprep.subr.bf16.mxu0 0
        %1173 = vmatpush2.bf16.msra.mxu0 0
        %1174 = vmatprep.subr.bf16.mxu0 0
        %1175 = vmatpush2.bf16.msra.mxu0 0
        %1176 = vmatprep.mubr.bf16.mxu0 0
        %1177 = vmatmul.mubr.bf16.gmra.mxu0 %v1038
        %v1178 = vpop.f32.mrf.mxu0
        %v1179 = vadd.f32 %v1015, %v1178
        %v1180 = vpop.f32.mrf.mxu0
        %v1181 = vpop.f32.mrf.mxu0
        %v1182 = vpop.f32.mrf.mxu0
        %1183 = vdwg.mxu0
        %v1188 = vunpack.c.l.b16 %v992
        %v1189 = vunpack.c.l.b16 %v993
        %v1190 = vunpack.c.l.b16 %v994
        %v1191 = vunpack.c.l.b16 %v995
        %v1192 = vpack.c.b16 %v1189, %v1188
        %v1193 = vpack.c.b16 %v1191, %v1190
        %1196 = vmatprep.subr.bf16.mxu0 0
        %1197 = vmatpush1.bf16.msra.mxu0 0
        %1198 = vmatprep.subr.bf16.mxu0 0
        %1199 = vmatpush1.bf16.msra.mxu0 0
        %1200 = vmatprep.subr.bf16.mxu0 0
        %1201 = vmatpush1.bf16.msra.mxu0 0
        %1202 = vmatprep.subr.bf16.mxu0 0
        %1203 = vmatpush1.bf16.msra.mxu0 0
        %1204 = vmatprep.subr.bf16.mxu0 0
        %1205 = vmatpush1.bf16.msra.mxu0 0
        %1206 = vmatprep.subr.bf16.mxu0 0
        %1207 = vmatpush1.bf16.msra.mxu0 0
        %1208 = vmatprep.subr.bf16.mxu0 0
        %1209 = vmatpush1.bf16.msra.mxu0 %v1193
        %1210 = vmatprep.subr.bf16.mxu0 0
        %1211 = vmatpush1.bf16.msra.mxu0 %v1192
        %1212 = vmatprep.subr.bf16.mxu0 0
        %1213 = vmatpush2.bf16.msra.mxu0 0
        %1214 = vmatprep.subr.bf16.mxu0 0
        %1215 = vmatpush2.bf16.msra.mxu0 0
        %1216 = vmatprep.subr.bf16.mxu0 0
        %1217 = vmatpush2.bf16.msra.mxu0 0
        %1218 = vmatprep.subr.bf16.mxu0 0
        %1219 = vmatpush2.bf16.msra.mxu0 0
        %1220 = vmatprep.subr.bf16.mxu0 0
        %1221 = vmatpush2.bf16.msra.mxu0 0
        %1222 = vmatprep.subr.bf16.mxu0 0
        %1223 = vmatpush2.bf16.msra.mxu0 0
        %1224 = vmatprep.subr.bf16.mxu0 0
        %1225 = vmatpush2.bf16.msra.mxu0 0
        %1226 = vmatprep.subr.bf16.mxu0 0
        %1227 = vmatpush2.bf16.msra.mxu0 0
        %1228 = vmatprep.mubr.bf16.mxu0 0
        %1229 = vmatmul.mubr.bf16.gmra.mxu0 %v1038
        %v1230 = vpop.f32.mrf.mxu0
        %v1231 = vadd.f32 %v1019, %v1230
        %v1232 = vpop.f32.mrf.mxu0
        %v1233 = vpop.f32.mrf.mxu0
        %v1234 = vpop.f32.mrf.mxu0
        %1235 = vdwg.mxu0
        %v1236 = vmul.f32 %v1075, 0.35355338
        %v1237 = vmul.f32 %v1127, 0.35355338
        %v1238 = vmul.f32 %v1179, 0.35355338
        %v1239 = vmul.f32 %v1231, 0.35355338
        %v1240 = vpack.c.bf16 %v1236, %v1236
        %v1241 = vpack.c.bf16 %v1237, %v1237
        %v1242 = vpack.c.bf16 %v1238, %v1238
        %v1243 = vpack.c.bf16 %v1239, %v1239
        %v1244 = vld [vmem:[#allocation2] sm:$0xf]
        %v1245 = vld [vmem:[#allocation2 + $0x4] sm:$0xf]
        %v1246 = vld [vmem:[#allocation2 + $0x8] sm:$0xf]
        %v1247 = vld [vmem:[#allocation2 + $0xc] sm:$0xf]
        %vm1248 = vcmask 64512
        %v1250 = vsel %vm1248, %v1240, 0
        %v1253 = vsel %vm1248, %v1244, 0
        %1255 = vmatprep.subr.bf16.mxu0 0
        %1256 = vmatpush1.bf16.xpose.msra.mxu0 0
        %1257 = vmatprep.subr.bf16.mxu0 0
        %1258 = vmatpush1.bf16.xpose.msra.mxu0 0
        %1259 = vmatprep.subr.bf16.mxu0 0
        %1260 = vmatpush1.bf16.xpose.msra.mxu0 0
        %1261 = vmatprep.subr.bf16.mxu0 0
        %1262 = vmatpush1.bf16.xpose.msra.mxu0 0
        %1263 = vmatprep.subr.bf16.mxu0 0
        %1264 = vmatpush1.bf16.xpose.msra.mxu0 0
        %1265 = vmatprep.subr.bf16.mxu0 0
        %1266 = vmatpush1.bf16.xpose.msra.mxu0 0
        %1267 = vmatprep.subr.bf16.mxu0 0
        %1268 = vmatpush1.bf16.xpose.msra.mxu0 0
        %1269 = vmatprep.subr.bf16.mxu0 0
        %1270 = vmatpush1.bf16.xpose.msra.mxu0 %v1253
        %1271 = vmatprep.subr.bf16.mxu0 0
        %1272 = vmatpush2.bf16.xpose.msra.mxu0 0
        %1273 = vmatprep.subr.bf16.mxu0 0
        %1274 = vmatpush2.bf16.xpose.msra.mxu0 0
        %1275 = vmatprep.subr.bf16.mxu0 0
        %1276 = vmatpush2.bf16.xpose.msra.mxu0 0
        %1277 = vmatprep.subr.bf16.mxu0 0
        %1278 = vmatpush2.bf16.xpose.msra.mxu0 0
        %1279 = vmatprep.subr.bf16.mxu0 0
        %1280 = vmatpush2.bf16.xpose.msra.mxu0 0
        %1281 = vmatprep.subr.bf16.mxu0 0
        %1282 = vmatpush2.bf16.xpose.msra.mxu0 0
        %1283 = vmatprep.subr.bf16.mxu0 0
        %1284 = vmatpush2.bf16.xpose.msra.mxu0 0
        %1285 = vmatprep.subr.bf16.mxu0 0
        %1286 = vmatpush2.bf16.xpose.msra.mxu0 0
        %1287 = vmatprep.mubr.bf16.mxu0 0
        %1288 = vmatmul.mubr.bf16.gmra.mxu0 %v1250
        %v1289 = vpop.f32.mrf.mxu0
        %v1290 = vadd.f32 0.0, %v1289
        %v1291 = vpop.f32.mrf.mxu0
        %v1292 = vpop.f32.mrf.mxu0
        %v1293 = vpop.f32.mrf.mxu0
        %1294 = vdwg.mxu0
        %v1296 = vsel %vm1248, %v1241, 0
        %v1299 = vsel %vm1248, %v1245, 0
        %1301 = vmatprep.subr.bf16.mxu0 0
        %1302 = vmatpush1.bf16.xpose.msra.mxu0 0
        %1303 = vmatprep.subr.bf16.mxu0 0
        %1304 = vmatpush1.bf16.xpose.msra.mxu0 0
        %1305 = vmatprep.subr.bf16.mxu0 0
        %1306 = vmatpush1.bf16.xpose.msra.mxu0 0
        %1307 = vmatprep.subr.bf16.mxu0 0
        %1308 = vmatpush1.bf16.xpose.msra.mxu0 0
        %1309 = vmatprep.subr.bf16.mxu0 0
        %1310 = vmatpush1.bf16.xpose.msra.mxu0 0
        %1311 = vmatprep.subr.bf16.mxu0 0
        %1312 = vmatpush1.bf16.xpose.msra.mxu0 0
        %1313 = vmatprep.subr.bf16.mxu0 0
        %1314 = vmatpush1.bf16.xpose.msra.mxu0 0
        %1315 = vmatprep.subr.bf16.mxu0 0
        %1316 = vmatpush1.bf16.xpose.msra.mxu0 %v1299
        %1317 = vmatprep.subr.bf16.mxu0 0
        %1318 = vmatpush2.bf16.xpose.msra.mxu0 0
        %1319 = vmatprep.subr.bf16.mxu0 0
        %1320 = vmatpush2.bf16.xpose.msra.mxu0 0
        %1321 = vmatprep.subr.bf16.mxu0 0
        %1322 = vmatpush2.bf16.xpose.msra.mxu0 0
        %1323 = vmatprep.subr.bf16.mxu0 0
        %1324 = vmatpush2.bf16.xpose.msra.mxu0 0
        %1325 = vmatprep.subr.bf16.mxu0 0
        %1326 = vmatpush2.bf16.xpose.msra.mxu0 0
        %1327 = vmatprep.subr.bf16.mxu0 0
        %1328 = vmatpush2.bf16.xpose.msra.mxu0 0
        %1329 = vmatprep.subr.bf16.mxu0 0
        %1330 = vmatpush2.bf16.xpose.msra.mxu0 0
        %1331 = vmatprep.subr.bf16.mxu0 0
        %1332 = vmatpush2.bf16.xpose.msra.mxu0 0
        %1333 = vmatprep.mubr.bf16.mxu0 0
        %1334 = vmatmul.mubr.bf16.gmra.mxu0 %v1296
        %v1335 = vpop.f32.mrf.mxu0
        %v1336 = vadd.f32 0.0, %v1335
        %v1337 = vpop.f32.mrf.mxu0
        %v1338 = vpop.f32.mrf.mxu0
        %v1339 = vpop.f32.mrf.mxu0
        %1340 = vdwg.mxu0
        %v1342 = vsel %vm1248, %v1242, 0
        %v1345 = vsel %vm1248, %v1246, 0
        %1347 = vmatprep.subr.bf16.mxu0 0
        %1348 = vmatpush1.bf16.xpose.msra.mxu0 0
        %1349 = vmatprep.subr.bf16.mxu0 0
        %1350 = vmatpush1.bf16.xpose.msra.mxu0 0
        %1351 = vmatprep.subr.bf16.mxu0 0
        %1352 = vmatpush1.bf16.xpose.msra.mxu0 0
        %1353 = vmatprep.subr.bf16.mxu0 0
        %1354 = vmatpush1.bf16.xpose.msra.mxu0 0
        %1355 = vmatprep.subr.bf16.mxu0 0
        %1356 = vmatpush1.bf16.xpose.msra.mxu0 0
        %1357 = vmatprep.subr.bf16.mxu0 0
        %1358 = vmatpush1.bf16.xpose.msra.mxu0 0
        %1359 = vmatprep.subr.bf16.mxu0 0
        %1360 = vmatpush1.bf16.xpose.msra.mxu0 0
        %1361 = vmatprep.subr.bf16.mxu0 0
        %1362 = vmatpush1.bf16.xpose.msra.mxu0 %v1345
        %1363 = vmatprep.subr.bf16.mxu0 0
        %1364 = vmatpush2.bf16.xpose.msra.mxu0 0
        %1365 = vmatprep.subr.bf16.mxu0 0
        %1366 = vmatpush2.bf16.xpose.msra.mxu0 0
        %1367 = vmatprep.subr.bf16.mxu0 0
        %1368 = vmatpush2.bf16.xpose.msra.mxu0 0
        %1369 = vmatprep.subr.bf16.mxu0 0
        %1370 = vmatpush2.bf16.xpose.msra.mxu0 0
        %1371 = vmatprep.subr.bf16.mxu0 0
        %1372 = vmatpush2.bf16.xpose.msra.mxu0 0
        %1373 = vmatprep.subr.bf16.mxu0 0
        %1374 = vmatpush2.bf16.xpose.msra.mxu0 0
        %1375 = vmatprep.subr.bf16.mxu0 0
        %1376 = vmatpush2.bf16.xpose.msra.mxu0 0
        %1377 = vmatprep.subr.bf16.mxu0 0
        %1378 = vmatpush2.bf16.xpose.msra.mxu0 0
        %1379 = vmatprep.mubr.bf16.mxu0 0
        %1380 = vmatmul.mubr.bf16.gmra.mxu0 %v1342
        %v1381 = vpop.f32.mrf.mxu0
        %v1382 = vadd.f32 0.0, %v1381
        %v1383 = vpop.f32.mrf.mxu0
        %v1384 = vpop.f32.mrf.mxu0
        %v1385 = vpop.f32.mrf.mxu0
        %1386 = vdwg.mxu0
        %v1388 = vsel %vm1248, %v1243, 0
        %v1391 = vsel %vm1248, %v1247, 0
        %1393 = vmatprep.subr.bf16.mxu0 0
        %1394 = vmatpush1.bf16.xpose.msra.mxu0 0
        %1395 = vmatprep.subr.bf16.mxu0 0
        %1396 = vmatpush1.bf16.xpose.msra.mxu0 0
        %1397 = vmatprep.subr.bf16.mxu0 0
        %1398 = vmatpush1.bf16.xpose.msra.mxu0 0
        %1399 = vmatprep.subr.bf16.mxu0 0
        %1400 = vmatpush1.bf16.xpose.msra.mxu0 0
        %1401 = vmatprep.subr.bf16.mxu0 0
        %1402 = vmatpush1.bf16.xpose.msra.mxu0 0
        %1403 = vmatprep.subr.bf16.mxu0 0
        %1404 = vmatpush1.bf16.xpose.msra.mxu0 0
        %1405 = vmatprep.subr.bf16.mxu0 0
        %1406 = vmatpush1.bf16.xpose.msra.mxu0 0
        %1407 = vmatprep.subr.bf16.mxu0 0
        %1408 = vmatpush1.bf16.xpose.msra.mxu0 %v1391
        %1409 = vmatprep.subr.bf16.mxu0 0
        %1410 = vmatpush2.bf16.xpose.msra.mxu0 0
        %1411 = vmatprep.subr.bf16.mxu0 0
        %1412 = vmatpush2.bf16.xpose.msra.mxu0 0
        %1413 = vmatprep.subr.bf16.mxu0 0
        %1414 = vmatpush2.bf16.xpose.msra.mxu0 0
        %1415 = vmatprep.subr.bf16.mxu0 0
        %1416 = vmatpush2.bf16.xpose.msra.mxu0 0
        %1417 = vmatprep.subr.bf16.mxu0 0
        %1418 = vmatpush2.bf16.xpose.msra.mxu0 0
        %1419 = vmatprep.subr.bf16.mxu0 0
        %1420 = vmatpush2.bf16.xpose.msra.mxu0 0
        %1421 = vmatprep.subr.bf16.mxu0 0
        %1422 = vmatpush2.bf16.xpose.msra.mxu0 0
        %1423 = vmatprep.subr.bf16.mxu0 0
        %1424 = vmatpush2.bf16.xpose.msra.mxu0 0
        %1425 = vmatprep.mubr.bf16.mxu0 0
        %1426 = vmatmul.mubr.bf16.gmra.mxu0 %v1388
        %v1427 = vpop.f32.mrf.mxu0
        %v1428 = vadd.f32 0.0, %v1427
        %v1429 = vpop.f32.mrf.mxu0
        %v1430 = vpop.f32.mrf.mxu0
        %v1431 = vpop.f32.mrf.mxu0
        %1432 = vdwg.mxu0
        %v1433 = vsel %vm1248, %v1290, -inf
        %1434 = vmax.xlane.f32.xlu0 %v1433
        %v1435 = vpop.xlane.xlu0 %1434
        %v1436 = vsel %vm1248, %v1336, -inf
        %1437 = vmax.xlane.f32.xlu0 %v1436
        %v1438 = vpop.xlane.xlu0 %1437
        %v1439 = vsel %vm1248, %v1382, -inf
        %1440 = vmax.xlane.f32.xlu0 %v1439
        %v1441 = vpop.xlane.xlu0 %1440
        %v1442 = vsel %vm1248, %v1428, -inf
        %1443 = vmax.xlane.f32.xlu0 %v1442
        %v1444 = vpop.xlane.xlu0 %1443
        %v1445 = vsub.f32 %v1290, %v1435
        %v1446 = vsub.f32 %v1336, %v1438
        %v1447 = vsub.f32 %v1382, %v1441
        %v1448 = vsub.f32 %v1428, %v1444
        %v1449 = vmul.f32 %v1445, 1.442695
        %v1450 = vpow.pop %v1449
        %v1451 = vmul.f32 %v1446, 1.442695
        %v1452 = vpow.pop %v1451
        %v1453 = vmul.f32 %v1447, 1.442695
        %v1454 = vpow.pop %v1453
        %v1455 = vmul.f32 %v1448, 1.442695
        %v1456 = vpow.pop %v1455
        %v1457 = vsel %vm1248, %v1450, 0.0
        %1458 = vadd.xlane.f32.xlu0 %v1457
        %v1459 = vpop.xlane.xlu0 %1458
        %v1460 = vsel %vm1248, %v1452, 0.0
        %1461 = vadd.xlane.f32.xlu0 %v1460
        %v1462 = vpop.xlane.xlu0 %1461
        %v1463 = vsel %vm1248, %v1454, 0.0
        %1464 = vadd.xlane.f32.xlu0 %v1463
        %v1465 = vpop.xlane.xlu0 %1464
        %v1466 = vsel %vm1248, %v1456, 0.0
        %1467 = vadd.xlane.f32.xlu0 %v1466
        %v1468 = vpop.xlane.xlu0 %1467
        %v1469 = vrcp.pop %v1459
        %v1470 = vrcp.pop %v1462
        %v1471 = vrcp.pop %v1465
        %v1472 = vrcp.pop %v1468
        %v1473 = vmul.f32 %v1450, %v1469
        %v1474 = vmul.f32 %v1452, %v1470
        %v1475 = vmul.f32 %v1454, %v1471
        %v1476 = vmul.f32 %v1456, %v1472
        %v1477 = vpack.c.bf16 %v1473, %v1473
        %v1478 = vpack.c.bf16 %v1474, %v1474
        %v1479 = vpack.c.bf16 %v1475, %v1475
        %v1480 = vpack.c.bf16 %v1476, %v1476
        %v1481 = vld [vmem:[#allocation3] sm:$0xf]
        %v1482 = vld [vmem:[#allocation3 + $0x4] sm:$0xf]
        %v1483 = vld [vmem:[#allocation3 + $0x8] sm:$0xf]
        %v1484 = vld [vmem:[#allocation3 + $0xc] sm:$0xf]
        %v1486 = vsel %vm1248, %v1477, 0
        %vm1488 = vcmask 1043456
        %v1490 = vsel %vm1488, %v1481, 0
        %1492 = vmatprep.subr.bf16.mxu0 0
        %1493 = vmatpush1.bf16.msra.mxu0 0
        %1494 = vmatprep.subr.bf16.mxu0 0
        %1495 = vmatpush1.bf16.msra.mxu0 0
        %1496 = vmatprep.subr.bf16.mxu0 0
        %1497 = vmatpush1.bf16.msra.mxu0 0
        %1498 = vmatprep.subr.bf16.mxu0 0
        %1499 = vmatpush1.bf16.msra.mxu0 0
        %1500 = vmatprep.subr.bf16.mxu0 0
        %1501 = vmatpush1.bf16.msra.mxu0 0
        %1502 = vmatprep.subr.bf16.mxu0 0
        %1503 = vmatpush1.bf16.msra.mxu0 0
        %1504 = vmatprep.subr.bf16.mxu0 0
        %1505 = vmatpush1.bf16.msra.mxu0 0
        %1506 = vmatprep.subr.bf16.mxu0 0
        %1507 = vmatpush1.bf16.msra.mxu0 %v1490
        %1508 = vmatprep.subr.bf16.mxu0 0
        %1509 = vmatpush2.bf16.msra.mxu0 0
        %1510 = vmatprep.subr.bf16.mxu0 0
        %1511 = vmatpush2.bf16.msra.mxu0 0
        %1512 = vmatprep.subr.bf16.mxu0 0
        %1513 = vmatpush2.bf16.msra.mxu0 0
        %1514 = vmatprep.subr.bf16.mxu0 0
        %1515 = vmatpush2.bf16.msra.mxu0 0
        %1516 = vmatprep.subr.bf16.mxu0 0
        %1517 = vmatpush2.bf16.msra.mxu0 0
        %1518 = vmatprep.subr.bf16.mxu0 0
        %1519 = vmatpush2.bf16.msra.mxu0 0
        %1520 = vmatprep.subr.bf16.mxu0 0
        %1521 = vmatpush2.bf16.msra.mxu0 0
        %1522 = vmatprep.subr.bf16.mxu0 0
        %1523 = vmatpush2.bf16.msra.mxu0 0
        %1524 = vmatprep.mubr.bf16.mxu0 0
        %1525 = vmatmul.mubr.bf16.gmra.mxu0 %v1486
        %v1526 = vpop.f32.mrf.mxu0
        %v1527 = vadd.f32 0.0, %v1526
        %v1528 = vpop.f32.mrf.mxu0
        %v1529 = vpop.f32.mrf.mxu0
        %v1530 = vpop.f32.mrf.mxu0
        %1531 = vdwg.mxu0
        %v1533 = vsel %vm1248, %v1478, 0
        %v1536 = vsel %vm1488, %v1482, 0
        %1538 = vmatprep.subr.bf16.mxu0 0
        %1539 = vmatpush1.bf16.msra.mxu0 0
        %1540 = vmatprep.subr.bf16.mxu0 0
        %1541 = vmatpush1.bf16.msra.mxu0 0
        %1542 = vmatprep.subr.bf16.mxu0 0
        %1543 = vmatpush1.bf16.msra.mxu0 0
        %1544 = vmatprep.subr.bf16.mxu0 0
        %1545 = vmatpush1.bf16.msra.mxu0 0
        %1546 = vmatprep.subr.bf16.mxu0 0
        %1547 = vmatpush1.bf16.msra.mxu0 0
        %1548 = vmatprep.subr.bf16.mxu0 0
        %1549 = vmatpush1.bf16.msra.mxu0 0
        %1550 = vmatprep.subr.bf16.mxu0 0
        %1551 = vmatpush1.bf16.msra.mxu0 0
        %1552 = vmatprep.subr.bf16.mxu0 0
        %1553 = vmatpush1.bf16.msra.mxu0 %v1536
        %1554 = vmatprep.subr.bf16.mxu0 0
        %1555 = vmatpush2.bf16.msra.mxu0 0
        %1556 = vmatprep.subr.bf16.mxu0 0
        %1557 = vmatpush2.bf16.msra.mxu0 0
        %1558 = vmatprep.subr.bf16.mxu0 0
        %1559 = vmatpush2.bf16.msra.mxu0 0
        %1560 = vmatprep.subr.bf16.mxu0 0
        %1561 = vmatpush2.bf16.msra.mxu0 0
        %1562 = vmatprep.subr.bf16.mxu0 0
        %1563 = vmatpush2.bf16.msra.mxu0 0
        %1564 = vmatprep.subr.bf16.mxu0 0
        %1565 = vmatpush2.bf16.msra.mxu0 0
        %1566 = vmatprep.subr.bf16.mxu0 0
        %1567 = vmatpush2.bf16.msra.mxu0 0
        %1568 = vmatprep.subr.bf16.mxu0 0
        %1569 = vmatpush2.bf16.msra.mxu0 0
        %1570 = vmatprep.mubr.bf16.mxu0 0
        %1571 = vmatmul.mubr.bf16.gmra.mxu0 %v1533
        %v1572 = vpop.f32.mrf.mxu0
        %v1573 = vadd.f32 0.0, %v1572
        %v1574 = vpop.f32.mrf.mxu0
        %v1575 = vpop.f32.mrf.mxu0
        %v1576 = vpop.f32.mrf.mxu0
        %1577 = vdwg.mxu0
        %v1579 = vsel %vm1248, %v1479, 0
        %v1582 = vsel %vm1488, %v1483, 0
        %1584 = vmatprep.subr.bf16.mxu0 0
        %1585 = vmatpush1.bf16.msra.mxu0 0
        %1586 = vmatprep.subr.bf16.mxu0 0
        %1587 = vmatpush1.bf16.msra.mxu0 0
        %1588 = vmatprep.subr.bf16.mxu0 0
        %1589 = vmatpush1.bf16.msra.mxu0 0
        %1590 = vmatprep.subr.bf16.mxu0 0
        %1591 = vmatpush1.bf16.msra.mxu0 0
        %1592 = vmatprep.subr.bf16.mxu0 0
        %1593 = vmatpush1.bf16.msra.mxu0 0
        %1594 = vmatprep.subr.bf16.mxu0 0
        %1595 = vmatpush1.bf16.msra.mxu0 0
        %1596 = vmatprep.subr.bf16.mxu0 0
        %1597 = vmatpush1.bf16.msra.mxu0 0
        %1598 = vmatprep.subr.bf16.mxu0 0
        %1599 = vmatpush1.bf16.msra.mxu0 %v1582
        %1600 = vmatprep.subr.bf16.mxu0 0
        %1601 = vmatpush2.bf16.msra.mxu0 0
        %1602 = vmatprep.subr.bf16.mxu0 0
        %1603 = vmatpush2.bf16.msra.mxu0 0
        %1604 = vmatprep.subr.bf16.mxu0 0
        %1605 = vmatpush2.bf16.msra.mxu0 0
        %1606 = vmatprep.subr.bf16.mxu0 0
        %1607 = vmatpush2.bf16.msra.mxu0 0
        %1608 = vmatprep.subr.bf16.mxu0 0
        %1609 = vmatpush2.bf16.msra.mxu0 0
        %1610 = vmatprep.subr.bf16.mxu0 0
        %1611 = vmatpush2.bf16.msra.mxu0 0
        %1612 = vmatprep.subr.bf16.mxu0 0
        %1613 = vmatpush2.bf16.msra.mxu0 0
        %1614 = vmatprep.subr.bf16.mxu0 0
        %1615 = vmatpush2.bf16.msra.mxu0 0
        %1616 = vmatprep.mubr.bf16.mxu0 0
        %1617 = vmatmul.mubr.bf16.gmra.mxu0 %v1579
        %v1618 = vpop.f32.mrf.mxu0
        %v1619 = vadd.f32 0.0, %v1618
        %v1620 = vpop.f32.mrf.mxu0
        %v1621 = vpop.f32.mrf.mxu0
        %v1622 = vpop.f32.mrf.mxu0
        %1623 = vdwg.mxu0
        %v1625 = vsel %vm1248, %v1480, 0
        %v1628 = vsel %vm1488, %v1484, 0
        %1630 = vmatprep.subr.bf16.mxu0 0
        %1631 = vmatpush1.bf16.msra.mxu0 0
        %1632 = vmatprep.subr.bf16.mxu0 0
        %1633 = vmatpush1.bf16.msra.mxu0 0
        %1634 = vmatprep.subr.bf16.mxu0 0
        %1635 = vmatpush1.bf16.msra.mxu0 0
        %1636 = vmatprep.subr.bf16.mxu0 0
        %1637 = vmatpush1.bf16.msra.mxu0 0
        %1638 = vmatprep.subr.bf16.mxu0 0
        %1639 = vmatpush1.bf16.msra.mxu0 0
        %1640 = vmatprep.subr.bf16.mxu0 0
        %1641 = vmatpush1.bf16.msra.mxu0 0
        %1642 = vmatprep.subr.bf16.mxu0 0
        %1643 = vmatpush1.bf16.msra.mxu0 0
        %1644 = vmatprep.subr.bf16.mxu0 0
        %1645 = vmatpush1.bf16.msra.mxu0 %v1628
        %1646 = vmatprep.subr.bf16.mxu0 0
        %1647 = vmatpush2.bf16.msra.mxu0 0
        %1648 = vmatprep.subr.bf16.mxu0 0
        %1649 = vmatpush2.bf16.msra.mxu0 0
        %1650 = vmatprep.subr.bf16.mxu0 0
        %1651 = vmatpush2.bf16.msra.mxu0 0
        %1652 = vmatprep.subr.bf16.mxu0 0
        %1653 = vmatpush2.bf16.msra.mxu0 0
        %1654 = vmatprep.subr.bf16.mxu0 0
        %1655 = vmatpush2.bf16.msra.mxu0 0
        %1656 = vmatprep.subr.bf16.mxu0 0
        %1657 = vmatpush2.bf16.msra.mxu0 0
        %1658 = vmatprep.subr.bf16.mxu0 0
        %1659 = vmatpush2.bf16.msra.mxu0 0
        %1660 = vmatprep.subr.bf16.mxu0 0
        %1661 = vmatpush2.bf16.msra.mxu0 0
        %1662 = vmatprep.mubr.bf16.mxu0 0
        %1663 = vmatmul.mubr.bf16.gmra.mxu0 %v1625
        %v1664 = vpop.f32.mrf.mxu0
        %v1665 = vadd.f32 0.0, %v1664
        %v1666 = vpop.f32.mrf.mxu0
        %v1667 = vpop.f32.mrf.mxu0
        %v1668 = vpop.f32.mrf.mxu0
        %1669 = vdwg.mxu0
        %v1670 = vpack.c.bf16 %v1527, %v1527
        %v1671 = vpack.c.bf16 %v1573, %v1573
        %v1672 = vpack.c.bf16 %v1619, %v1619
        %v1673 = vpack.c.bf16 %v1665, %v1665
        %v1674 = vld [vmem:[%s9] sm:$0xf]
        %v1675 = vld [vmem:[%s9 + $0x4] sm:$0xf]
        %v1676 = vld [vmem:[%s9 + $0x8] sm:$0xf]
        %v1677 = vld [vmem:[%s9 + $0xc] sm:$0xf]
        %v1679 = vsel %vm1248, %v1670, 0
        %v1682 = vsel %vm1488, %v1674, 0
        %1684 = vmatprep.subr.bf16.mxu0 0
        %1685 = vmatpush1.bf16.msra.mxu0 0
        %1686 = vmatprep.subr.bf16.mxu0 0
        %1687 = vmatpush1.bf16.msra.mxu0 0
        %1688 = vmatprep.subr.bf16.mxu0 0
        %1689 = vmatpush1.bf16.msra.mxu0 0
        %1690 = vmatprep.subr.bf16.mxu0 0
        %1691 = vmatpush1.bf16.msra.mxu0 0
        %1692 = vmatprep.subr.bf16.mxu0 0
        %1693 = vmatpush1.bf16.msra.mxu0 0
        %1694 = vmatprep.subr.bf16.mxu0 0
        %1695 = vmatpush1.bf16.msra.mxu0 0
        %1696 = vmatprep.subr.bf16.mxu0 0
        %1697 = vmatpush1.bf16.msra.mxu0 0
        %1698 = vmatprep.subr.bf16.mxu0 0
        %1699 = vmatpush1.bf16.msra.mxu0 %v1682
        %1700 = vmatprep.subr.bf16.mxu0 0
        %1701 = vmatpush2.bf16.msra.mxu0 0
        %1702 = vmatprep.subr.bf16.mxu0 0
        %1703 = vmatpush2.bf16.msra.mxu0 0
        %1704 = vmatprep.subr.bf16.mxu0 0
        %1705 = vmatpush2.bf16.msra.mxu0 0
        %1706 = vmatprep.subr.bf16.mxu0 0
        %1707 = vmatpush2.bf16.msra.mxu0 0
        %1708 = vmatprep.subr.bf16.mxu0 0
        %1709 = vmatpush2.bf16.msra.mxu0 0
        %1710 = vmatprep.subr.bf16.mxu0 0
        %1711 = vmatpush2.bf16.msra.mxu0 0
        %1712 = vmatprep.subr.bf16.mxu0 0
        %1713 = vmatpush2.bf16.msra.mxu0 0
        %1714 = vmatprep.subr.bf16.mxu0 0
        %1715 = vmatpush2.bf16.msra.mxu0 0
        %1716 = vmatprep.mubr.bf16.mxu0 0
        %1717 = vmatmul.mubr.bf16.gmra.mxu0 %v1679
        %v1718 = vpop.f32.mrf.mxu0
        %v1719 = vadd.f32 0.0, %v1718
        %v1720 = vpop.f32.mrf.mxu0
        %v1721 = vpop.f32.mrf.mxu0
        %v1722 = vpop.f32.mrf.mxu0
        %1723 = vdwg.mxu0
        %v1725 = vsel %vm1248, %v1671, 0
        %v1728 = vsel %vm1488, %v1675, 0
        %1730 = vmatprep.subr.bf16.mxu0 0
        %1731 = vmatpush1.bf16.msra.mxu0 0
        %1732 = vmatprep.subr.bf16.mxu0 0
        %1733 = vmatpush1.bf16.msra.mxu0 0
        %1734 = vmatprep.subr.bf16.mxu0 0
        %1735 = vmatpush1.bf16.msra.mxu0 0
        %1736 = vmatprep.subr.bf16.mxu0 0
        %1737 = vmatpush1.bf16.msra.mxu0 0
        %1738 = vmatprep.subr.bf16.mxu0 0
        %1739 = vmatpush1.bf16.msra.mxu0 0
        %1740 = vmatprep.subr.bf16.mxu0 0
        %1741 = vmatpush1.bf16.msra.mxu0 0
        %1742 = vmatprep.subr.bf16.mxu0 0
        %1743 = vmatpush1.bf16.msra.mxu0 0
        %1744 = vmatprep.subr.bf16.mxu0 0
        %1745 = vmatpush1.bf16.msra.mxu0 %v1728
        %1746 = vmatprep.subr.bf16.mxu0 0
        %1747 = vmatpush2.bf16.msra.mxu0 0
        %1748 = vmatprep.subr.bf16.mxu0 0
        %1749 = vmatpush2.bf16.msra.mxu0 0
        %1750 = vmatprep.subr.bf16.mxu0 0
        %1751 = vmatpush2.bf16.msra.mxu0 0
        %1752 = vmatprep.subr.bf16.mxu0 0
        %1753 = vmatpush2.bf16.msra.mxu0 0
        %1754 = vmatprep.subr.bf16.mxu0 0
        %1755 = vmatpush2.bf16.msra.mxu0 0
        %1756 = vmatprep.subr.bf16.mxu0 0
        %1757 = vmatpush2.bf16.msra.mxu0 0
        %1758 = vmatprep.subr.bf16.mxu0 0
        %1759 = vmatpush2.bf16.msra.mxu0 0
        %1760 = vmatprep.subr.bf16.mxu0 0
        %1761 = vmatpush2.bf16.msra.mxu0 0
        %1762 = vmatprep.mubr.bf16.mxu0 0
        %1763 = vmatmul.mubr.bf16.gmra.mxu0 %v1725
        %v1764 = vpop.f32.mrf.mxu0
        %v1765 = vadd.f32 0.0, %v1764
        %v1766 = vpop.f32.mrf.mxu0
        %v1767 = vpop.f32.mrf.mxu0
        %v1768 = vpop.f32.mrf.mxu0
        %1769 = vdwg.mxu0
        %v1771 = vsel %vm1248, %v1672, 0
        %v1774 = vsel %vm1488, %v1676, 0
        %1776 = vmatprep.subr.bf16.mxu0 0
        %1777 = vmatpush1.bf16.msra.mxu0 0
        %1778 = vmatprep.subr.bf16.mxu0 0
        %1779 = vmatpush1.bf16.msra.mxu0 0
        %1780 = vmatprep.subr.bf16.mxu0 0
        %1781 = vmatpush1.bf16.msra.mxu0 0
        %1782 = vmatprep.subr.bf16.mxu0 0
        %1783 = vmatpush1.bf16.msra.mxu0 0
        %1784 = vmatprep.subr.bf16.mxu0 0
        %1785 = vmatpush1.bf16.msra.mxu0 0
        %1786 = vmatprep.subr.bf16.mxu0 0
        %1787 = vmatpush1.bf16.msra.mxu0 0
        %1788 = vmatprep.subr.bf16.mxu0 0
        %1789 = vmatpush1.bf16.msra.mxu0 0
        %1790 = vmatprep.subr.bf16.mxu0 0
        %1791 = vmatpush1.bf16.msra.mxu0 %v1774
        %1792 = vmatprep.subr.bf16.mxu0 0
        %1793 = vmatpush2.bf16.msra.mxu0 0
        %1794 = vmatprep.subr.bf16.mxu0 0
        %1795 = vmatpush2.bf16.msra.mxu0 0
        %1796 = vmatprep.subr.bf16.mxu0 0
        %1797 = vmatpush2.bf16.msra.mxu0 0
        %1798 = vmatprep.subr.bf16.mxu0 0
        %1799 = vmatpush2.bf16.msra.mxu0 0
        %1800 = vmatprep.subr.bf16.mxu0 0
        %1801 = vmatpush2.bf16.msra.mxu0 0
        %1802 = vmatprep.subr.bf16.mxu0 0
        %1803 = vmatpush2.bf16.msra.mxu0 0
        %1804 = vmatprep.subr.bf16.mxu0 0
        %1805 = vmatpush2.bf16.msra.mxu0 0
        %1806 = vmatprep.subr.bf16.mxu0 0
        %1807 = vmatpush2.bf16.msra.mxu0 0
        %1808 = vmatprep.mubr.bf16.mxu0 0
        %1809 = vmatmul.mubr.bf16.gmra.mxu0 %v1771
        %v1810 = vpop.f32.mrf.mxu0
        %v1811 = vadd.f32 0.0, %v1810
        %v1812 = vpop.f32.mrf.mxu0
        %v1813 = vpop.f32.mrf.mxu0
        %v1814 = vpop.f32.mrf.mxu0
        %1815 = vdwg.mxu0
        %v1817 = vsel %vm1248, %v1673, 0
        %v1820 = vsel %vm1488, %v1677, 0
        %1822 = vmatprep.subr.bf16.mxu0 0
        %1823 = vmatpush1.bf16.msra.mxu0 0
        %1824 = vmatprep.subr.bf16.mxu0 0
        %1825 = vmatpush1.bf16.msra.mxu0 0
        %1826 = vmatprep.subr.bf16.mxu0 0
        %1827 = vmatpush1.bf16.msra.mxu0 0
        %1828 = vmatprep.subr.bf16.mxu0 0
        %1829 = vmatpush1.bf16.msra.mxu0 0
        %1830 = vmatprep.subr.bf16.mxu0 0
        %1831 = vmatpush1.bf16.msra.mxu0 0
        %1832 = vmatprep.subr.bf16.mxu0 0
        %1833 = vmatpush1.bf16.msra.mxu0 0
        %1834 = vmatprep.subr.bf16.mxu0 0
        %1835 = vmatpush1.bf16.msra.mxu0 0
        %1836 = vmatprep.subr.bf16.mxu0 0
        %1837 = vmatpush1.bf16.msra.mxu0 %v1820
        %1838 = vmatprep.subr.bf16.mxu0 0
        %1839 = vmatpush2.bf16.msra.mxu0 0
        %1840 = vmatprep.subr.bf16.mxu0 0
        %1841 = vmatpush2.bf16.msra.mxu0 0
        %1842 = vmatprep.subr.bf16.mxu0 0
        %1843 = vmatpush2.bf16.msra.mxu0 0
        %1844 = vmatprep.subr.bf16.mxu0 0
        %1845 = vmatpush2.bf16.msra.mxu0 0
        %1846 = vmatprep.subr.bf16.mxu0 0
        %1847 = vmatpush2.bf16.msra.mxu0 0
        %1848 = vmatprep.subr.bf16.mxu0 0
        %1849 = vmatpush2.bf16.msra.mxu0 0
        %1850 = vmatprep.subr.bf16.mxu0 0
        %1851 = vmatpush2.bf16.msra.mxu0 0
        %1852 = vmatprep.subr.bf16.mxu0 0
        %1853 = vmatpush2.bf16.msra.mxu0 0
        %1854 = vmatprep.mubr.bf16.mxu0 0
        %1855 = vmatmul.mubr.bf16.gmra.mxu0 %v1817
        %v1856 = vpop.f32.mrf.mxu0
        %v1857 = vadd.f32 0.0, %v1856
        %v1858 = vpop.f32.mrf.mxu0
        %v1859 = vpop.f32.mrf.mxu0
        %v1860 = vpop.f32.mrf.mxu0
        %1861 = vdwg.mxu0
        %v1862 = vsel %vm1036, %v1719, 0.0
        %v1863 = vsel %vm1036, %v1765, 0.0
        %v1864 = vadd.f32 %v1862, %v1863
        %v1865 = vsel %vm1036, %v1811, 0.0
        %v1866 = vadd.f32 %v1864, %v1865
        %v1867 = vsel %vm1036, %v1857, 0.0
        %v1868 = vadd.f32 %v1866, %v1867
        %v1869 = vld [vmem:[%s10] sm:$0x1]
        %v1871 = vlaneseq
        %v1872 = vshrl.u32 %v1871, 7
        %v1873 = vsub.s32 0, %v1872
        %v1874 = vrot.slane %v1869, %v1873
        %v1876 = vadd.f32 %v1868, %v1874
        %1877 = vst.msk [vmem:[%s425] sm:$0xff] %vm1036, %v1876
        %s1878 = sand.u32 %s295, 1
        %s1879 = scalar_lea.sflag [#allocation5], %s1878
        %s1880 = sand.u32 %s295, 1
        %s1881 = smul.addr %s1880, 8
        %s1882 = scalar_lea.vmem [#allocation4], %s1881
        // Predicated region
        $region69: #{tpu_custom_call.1} parent=63 // pred_check
          %p1883 = pneg %p305
        $region70: #{tpu_custom_call.1} parent=63 // pred_check_branch
          %1885 = sbr.rel (%p1883) target = $region72
        $region71: #{tpu_custom_call.1} parent=63 // pred_region
          %s1887 = ssub.s32 128, 128
          %1888 = vsyncadd %s1879, %s1887
          %s1889 = sadd.s32 %s30, %s29
          %s1890 = smul.addr %s1889, 128
          %s1891 = scalar_lea.hbm %s11, %s1890
          %s1893 = sshll.u32 %s1882, 4
          %s1894 = int_to_ptr.vmem [resolvable:$true] %s1893
          %1896 = dma.vmem_to_hbm [thread:$0]  %s1894, 128, %s1891, %s1879
        $region72: #{tpu_custom_call.1} parent=63 // pred_fallthru
          _
      $region64: #{tpu_custom_call.1} parent=5 // pred_fallthru
        _
      %p1897 = scmp.le.s32.totalorder 2, %s20
      // Predicated region
      $region73: #{tpu_custom_call.1} parent=5 // pred_check
        %p1898 = pneg %p1897
      $region74: #{tpu_custom_call.1} parent=5 // pred_check_branch
        %1900 = sbr.rel (%p1898) target = $region76
      $region75: #{tpu_custom_call.1} parent=5 // pred_region
        %s1901 = ssub.s32 %s20, 2
        // Predicated region
        $region77: #{tpu_custom_call.1} parent=75 // pred_check
          %p1902 = pneg %p311
        $region78: #{tpu_custom_call.1} parent=75 // pred_check_branch
          %1904 = sbr.rel (%p1902) target = $region80
        $region79: #{tpu_custom_call.1} parent=75 // pred_region
          %s1905 = sand.u32 %s296, 1
          %s1906 = scalar_lea.sflag [#allocation5], %s1905
          %s1907 = sand.u32 %s296, 1
          %s1908 = smul.addr %s1907, 8
          %s1909 = scalar_lea.vmem [#allocation4], %s1908
          %1910 = dma.done %s1906, 128
        $region80: #{tpu_custom_call.1} parent=75 // pred_fallthru
          _
      $region76: #{tpu_custom_call.1} parent=5 // pred_fallthru
        _
    $region6: #{tpu_custom_call.1} parent=1 // loop_footer
      %s24 = sadd.s32 1, %s20
    $region7: #{tpu_custom_call.1} parent=1 // loop_footer_branch
      %19 = sbr.rel target = $region3
    $region8: #{tpu_custom_call.1} parent=1 // loop_exit
      _
    %1911 = vsyncpa [#allocation5], 1
    %s1912 = scalar_lea.sflag [#allocation5], 1
    %1913 = vsyncpa %s1912, 1

</llo_original>
